<compile_context>
chip_gen: v5e
topology: v5e:2x2
jax: 0.10.0
libtpu: 0.0.40
codegen_flags: <defaults>
</compile_context>

<pallas_src>
import functools

import jax
import jax.numpy as jnp
from jax.experimental import pallas as pl
from jax.experimental.pallas import tpu as pltpu


def _sigmoid_tanh(x):
    # sigmoid(x) = 0.5 * tanh(0.5 * x) + 0.5 -- a single EUP op (tanh); the mul/adds
    # go to the VALU, which has slack in this kernel.
    return 0.5 * jnp.tanh(0.5 * x) + 0.5


def ncd_kernel(theta_ref, hdiff_ref, qd_ref,
               w1_ref, b1_ref, w2_ref, b2_ref, w3t_ref, b3_ref,
               out_ref, *, act_dtype):
    tb, C = theta_ref.shape
    te = qd_ref.shape[0]

    theta = theta_ref[...]                                           # (tb, C) f32
    hdiff = hdiff_ref[...]                                           # (te, C) f32
    qd = qd_ref[...]                                                 # (te, C) f32

    # x = (theta - h_diff) * (h_disc * q); the exercise-only product was hoisted.
    x = (theta[:, None, :] - hdiff[None, :, :]) * qd[None, :, :]     # (tb, te, C) f32
    xb = x.reshape(tb * te, C).astype(jnp.bfloat16)

    # MXU matmuls: bf16 operands, f32 accumulation. Weights arrive pre-cast to bf16.
    z1 = jnp.dot(xb, w1_ref[...], preferred_element_type=jnp.float32) + b1_ref[...]
    h1 = _sigmoid_tanh(z1.astype(act_dtype)).astype(jnp.bfloat16)    # (rows, 512)
    z2 = jnp.dot(h1, w2_ref[...], preferred_element_type=jnp.float32) + b2_ref[...]
    h2 = _sigmoid_tanh(z2.astype(act_dtype))                         # (rows, 256)

    # Final 256 -> 1 layer: VPU multiply + lane reduction (an N=1 MXU matmul would use a
    # single result lane).  Emit the block lane-dense as (tb, te).
    h2r = h2.reshape(tb, te, 256)
    z3 = jnp.sum(h2r * w3t_ref[...], axis=-1) + b3_ref[...]          # (tb, te) f32
    out_ref[...] = _sigmoid_tanh(z3)


def _choose_tiles(B, E, target_rows):
    """Pick (TB, TE, B_pad, E_pad) so one grid step touches <= ~target_rows MLP rows."""
    target_rows = max(8, target_rows)
    # Exercise tile: full E when small, else a multiple of 128 (lane-dense output block).
    max_te = min(512, max(128, (target_rows // 8) // 128 * 128))
    if E <= max_te:
        te, e_pad = E, E
    else:
        te = max_te
        e_pad = ((E + te - 1) // te) * te
    # Batch tile: TB * TE <= target_rows; TB is a multiple of 8 unless it covers all of B.
    tb = max(1, target_rows // te)
    if tb >= B:
        tb, b_pad = B, B
    else:
        tb = max(8, (tb // 8) * 8)
        b_pad = ((B + tb - 1) // tb) * tb
    return tb, te, b_pad, e_pad


def _bf16_activations_supported():
    # v6e / v7x have bf16 VPU+EUP; v5e and older do not (keep activations f32 there).
    try:
        kind = jax.devices()[0].device_kind.lower()
    except Exception:
        return False
    return ("v6" in kind) or ("v7" in kind)


def ncd_forward(theta, q_matrix, params, *, target_rows=2048):
    # target_rows ~= MLP rows per grid step.  2048 keeps the working set well under the
    # 48 MiB limit on every generation (v7x has only 64 MiB VMEM/TC); on v5e/v6e (128 MiB)
    # pass 4096-8192 to further amortize the ~0.35us per grid step.
    B, C = theta.shape
    E, _ = q_matrix.shape
    diff_emb, disc_emb, w1, b1, w2, b2, w3, b3 = params

    # Grid-invariant exercise-side math and weight casts hoisted out of the kernel
    # (the grid is a serial per-core loop; anything in-kernel is redone every step).
    h_diff = jax.nn.sigmoid(diff_emb)                         # (E, C) f32
    qd = (jax.nn.sigmoid(disc_emb) * 10.0) * q_matrix         # (E, C) f32
    w1b = w1.astype(jnp.bfloat16)                             # (C, 512)
    w2b = w2.astype(jnp.bfloat16)                             # (512, 256)
    w3t = jnp.transpose(w3)                                   # (1, 256) f32, lane-major

    TB, TE, B_pad, E_pad = _choose_tiles(B, E, target_rows)
    theta_p = theta if B_pad == B else jnp.pad(theta, ((0, B_pad - B), (0, 0)))
    if E_pad != E:
        h_diff = jnp.pad(h_diff, ((0, E_pad - E), (0, 0)))
        qd = jnp.pad(qd, ((0, E_pad - E), (0, 0)))
    grid = (B_pad // TB, E_pad // TE)

    act_dtype = jnp.bfloat16 if _bf16_activations_supported() else jnp.float32
    kernel = functools.partial(ncd_kernel, act_dtype=act_dtype)

    flops = 2 * B_pad * E_pad * (C * 512 + 512 * 256 + 256)
    transcendentals = B_pad * E_pad * (512 + 256 + 1)
    bytes_accessed = 4 * (theta_p.size + h_diff.size + qd.size + w3t.size + b1.size
                          + b2.size + b3.size + B_pad * E_pad) + 2 * (w1b.size + w2b.size)

    def run(single_buffer_consts):
        def const2d(a):
            if single_buffer_consts:
                # Grid-constant operands never change block index: single-buffer them
                # (biggest payoff on v7x's 64 MiB VMEM, free elsewhere).
                return pl.BlockSpec(a.shape, lambda i, j: (0, 0),
                                    pipeline_mode=pl.Buffered(1))
            return pl.BlockSpec(a.shape, lambda i, j: (0, 0))

        return pl.pallas_call(
            kernel,
            out_shape=jax.ShapeDtypeStruct((B_pad, E_pad), jnp.float32),
            grid=grid,
            in_specs=[
                pl.BlockSpec((TB, C), lambda i, j: (i, 0)),   # theta: tiled over batch
                pl.BlockSpec((TE, C), lambda i, j: (j, 0)),   # h_diff: tiled over exercise
                pl.BlockSpec((TE, C), lambda i, j: (j, 0)),   # qd: tiled over exercise
                const2d(w1b), const2d(b1),
                const2d(w2b), const2d(b2),
                const2d(w3t), const2d(b3),
            ],
            out_specs=pl.BlockSpec((TB, TE), lambda i, j: (i, j)),   # lane-dense output
            compiler_params=pltpu.CompilerParams(
                # TODO(synk): on v7x consider CORE_PARALLEL on the batch axis to force
                # sharding across its two TensorCores.
                dimension_semantics=("parallel", "parallel"),
                vmem_limit_bytes=48 * 1024 * 1024),
            cost_estimate=pl.CostEstimate(
                flops=flops,
                transcendentals=transcendentals,
                bytes_accessed=bytes_accessed),
        )(theta_p, h_diff, qd, w1b, b1, w2b, b2, w3t, b3)

    try:
        out = run(single_buffer_consts=True)
    except Exception:
        # Fallback if this jax build rejects pipeline_mode=pl.Buffered(1).
        out = run(single_buffer_consts=False)

    if B_pad != B or E_pad != E:
        out = out[:B, :E]
    return out


def ncd_reference(theta, q_matrix, params):
    diff_emb, disc_emb, w1, b1, w2, b2, w3, b3 = params
    h_diff = jax.nn.sigmoid(diff_emb)          # (E, C)
    h_disc = jax.nn.sigmoid(disc_emb) * 10.0   # (E, 1)
    x = h_disc[None] * (theta[:, None, :] - h_diff[None]) * q_matrix[None]
    h1 = jax.nn.sigmoid(x @ w1 + b1)
    h2 = jax.nn.sigmoid(h1 @ w2 + b2)
    h3 = jax.nn.sigmoid(h2 @ w3 + b3)
    return h3[..., 0]


def init_params(key, n_exercise, n_concept):
    ks = jax.random.split(key, 8)

    def linear(k, fan_in, fan_out):
        kw, kb = jax.random.split(k)
        bound = 1.0 / jnp.sqrt(fan_in)
        w = jax.random.uniform(kw, (fan_in, fan_out), jnp.float32, -bound, bound)
        b = jax.random.uniform(kb, (1, fan_out), jnp.float32, -bound, bound)
        return w, b

    diff_emb = jax.random.uniform(ks[0], (n_exercise, n_concept), jnp.float32)  # torch.rand
    disc_emb = jax.random.uniform(ks[1], (n_exercise, 1), jnp.float32)          # torch.rand
    w1, b1 = linear(ks[2], n_concept, 512)
    w2, b2 = linear(ks[3], 512, 256)
    w3, b3 = linear(ks[4], 256, 1)
    return (diff_emb, disc_emb, w1, b1, w2, b2, w3, b3)


if __name__ == "__main__":
    B, n_exercise, n_concept = 2, 8, 32

    key = jax.random.PRNGKey(0)
    k_params, k_theta, k_q = jax.random.split(key, 3)

    params = init_params(k_params, n_exercise, n_concept)
    theta = jax.random.uniform(k_theta, (B, n_concept), jnp.float32)
    q_matrix = jax.random.bernoulli(k_q, 0.5, (n_exercise, n_concept)).astype(jnp.float32)

    out = ncd_forward(theta, q_matrix, params)
    out = jax.block_until_ready(out)

    ref = ncd_reference(theta, q_matrix, params)
    assert out.shape == (B, n_exercise), out.shape
    # bf16 matmul operands (+ bf16 activations on v6e/v7x) -> loose tolerance.
    assert jnp.allclose(out, ref, atol=2e-2, rtol=2e-2), (out, ref)

    print("KERNEL_OK")
</pallas_src>

<mosaic_0001>
module attributes {stable_mosaic.version = 11 : i64} {
  func.func @ncd_kernel(%arg0: i32, %arg1: i32, %arg2: memref<2x32xf32, #tpu.memory_space<vmem>>, %arg3: memref<8x32xf32, #tpu.memory_space<vmem>>, %arg4: memref<8x32xf32, #tpu.memory_space<vmem>>, %arg5: memref<32x512xbf16, #tpu.memory_space<vmem>>, %arg6: memref<1x512xf32, #tpu.memory_space<vmem>>, %arg7: memref<512x256xbf16, #tpu.memory_space<vmem>>, %arg8: memref<1x256xf32, #tpu.memory_space<vmem>>, %arg9: memref<1x256xf32, #tpu.memory_space<vmem>>, %arg10: memref<1x1xf32, #tpu.memory_space<vmem>>, %arg11: memref<2x8xf32, #tpu.memory_space<vmem>>) attributes {dimension_semantics = [#tpu.dimension_semantics<parallel>, #tpu.dimension_semantics<parallel>], iteration_bounds = array<i64: 1, 1>, scalar_prefetch = 0 : i64, scratch_operands = 0 : i64, tpu.core_type = #tpu.core_type<tc>, window_params = [{transform_indices = @transform_0, window_bounds = array<i64: 2, 32>}, {transform_indices = @transform_1, window_bounds = array<i64: 8, 32>}, {transform_indices = @transform_2, window_bounds = array<i64: 8, 32>}, {pipeline_mode = #tpu.pipeline_mode<synchronous>, transform_indices = @transform_3, window_bounds = array<i64: 32, 512>}, {pipeline_mode = #tpu.pipeline_mode<synchronous>, transform_indices = @transform_4, window_bounds = array<i64: 1, 512>}, {pipeline_mode = #tpu.pipeline_mode<synchronous>, transform_indices = @transform_5, window_bounds = array<i64: 512, 256>}, {pipeline_mode = #tpu.pipeline_mode<synchronous>, transform_indices = @transform_6, window_bounds = array<i64: 1, 256>}, {pipeline_mode = #tpu.pipeline_mode<synchronous>, transform_indices = @transform_7, window_bounds = array<i64: 1, 256>}, {pipeline_mode = #tpu.pipeline_mode<synchronous>, transform_indices = @transform_8, window_bounds = array<i64: 1, 1>}, {transform_indices = @transform_9, window_bounds = array<i64: 2, 8>}]} {
    %c0 = arith.constant 0 : index
    %c0_0 = arith.constant 0 : index
    %0 = vector.load %arg2[%c0, %c0_0] : memref<2x32xf32, #tpu.memory_space<vmem>>, vector<2x32xf32>
    %c0_1 = arith.constant 0 : index
    %c0_2 = arith.constant 0 : index
    %1 = vector.load %arg3[%c0_1, %c0_2] : memref<8x32xf32, #tpu.memory_space<vmem>>, vector<8x32xf32>
    %c0_3 = arith.constant 0 : index
    %c0_4 = arith.constant 0 : index
    %2 = vector.load %arg4[%c0_3, %c0_4] : memref<8x32xf32, #tpu.memory_space<vmem>>, vector<8x32xf32>
    %3 = vector.shape_cast %0 : vector<2x32xf32> to vector<2x1x32xf32>
    %4 = vector.shape_cast %1 : vector<8x32xf32> to vector<1x8x32xf32>
    %5 = vector.broadcast %3 : vector<2x1x32xf32> to vector<2x8x32xf32>
    %6 = vector.broadcast %4 : vector<1x8x32xf32> to vector<2x8x32xf32>
    %7 = arith.subf %5, %6 : vector<2x8x32xf32>
    %8 = vector.shape_cast %2 : vector<8x32xf32> to vector<1x8x32xf32>
    %9 = vector.broadcast %8 : vector<1x8x32xf32> to vector<2x8x32xf32>
    %10 = arith.mulf %7, %9 : vector<2x8x32xf32>
    %11 = vector.shape_cast %10 : vector<2x8x32xf32> to vector<16x32xf32>
    %12 = arith.truncf %11 : vector<16x32xf32> to vector<16x32xbf16>
    %c0_5 = arith.constant 0 : index
    %c0_6 = arith.constant 0 : index
    %13 = vector.load %arg5[%c0_5, %c0_6] : memref<32x512xbf16, #tpu.memory_space<vmem>>, vector<32x512xbf16>
    %cst = arith.constant dense<0.000000e+00> : vector<16x512xf32>
    %14 = tpu.matmul %12, %13, %cst {dimension_numbers = #tpu.dot_dimension_numbers<[1], [0], [0], [1], [0, 0, 1, 1], [], []>} : vector<16x32xbf16>, vector<32x512xbf16>, vector<16x512xf32> -> vector<16x512xf32>
    %c0_7 = arith.constant 0 : index
    %c0_8 = arith.constant 0 : index
    %15 = vector.load %arg6[%c0_7, %c0_8] : memref<1x512xf32, #tpu.memory_space<vmem>>, vector<1x512xf32>
    %16 = vector.broadcast %15 : vector<1x512xf32> to vector<16x512xf32>
    %17 = arith.addf %14, %16 : vector<16x512xf32>
    %cst_9 = arith.constant 5.000000e-01 : f32
    %18 = vector.broadcast %cst_9 : f32 to vector<16x512xf32>
    %19 = arith.mulf %18, %17 : vector<16x512xf32>
    %20 = math.tanh %19 : vector<16x512xf32>
    %cst_10 = arith.constant 5.000000e-01 : f32
    %21 = vector.broadcast %cst_10 : f32 to vector<16x512xf32>
    %22 = arith.mulf %21, %20 : vector<16x512xf32>
    %cst_11 = arith.constant 5.000000e-01 : f32
    %23 = vector.broadcast %cst_11 : f32 to vector<16x512xf32>
    %24 = arith.addf %22, %23 : vector<16x512xf32>
    %25 = arith.truncf %24 : vector<16x512xf32> to vector<16x512xbf16>
    %c0_12 = arith.constant 0 : index
    %c0_13 = arith.constant 0 : index
    %26 = vector.load %arg7[%c0_12, %c0_13] : memref<512x256xbf16, #tpu.memory_space<vmem>>, vector<512x256xbf16>
    %cst_14 = arith.constant dense<0.000000e+00> : vector<16x256xf32>
    %27 = tpu.matmul %25, %26, %cst_14 {dimension_numbers = #tpu.dot_dimension_numbers<[1], [0], [0], [1], [0, 0, 1, 1], [], []>} : vector<16x512xbf16>, vector<512x256xbf16>, vector<16x256xf32> -> vector<16x256xf32>
    %c0_15 = arith.constant 0 : index
    %c0_16 = arith.constant 0 : index
    %28 = vector.load %arg8[%c0_15, %c0_16] : memref<1x256xf32, #tpu.memory_space<vmem>>, vector<1x256xf32>
    %29 = vector.broadcast %28 : vector<1x256xf32> to vector<16x256xf32>
    %30 = arith.addf %27, %29 : vector<16x256xf32>
    %cst_17 = arith.constant 5.000000e-01 : f32
    %31 = vector.broadcast %cst_17 : f32 to vector<16x256xf32>
    %32 = arith.mulf %31, %30 : vector<16x256xf32>
    %33 = math.tanh %32 : vector<16x256xf32>
    %cst_18 = arith.constant 5.000000e-01 : f32
    %34 = vector.broadcast %cst_18 : f32 to vector<16x256xf32>
    %35 = arith.mulf %34, %33 : vector<16x256xf32>
    %cst_19 = arith.constant 5.000000e-01 : f32
    %36 = vector.broadcast %cst_19 : f32 to vector<16x256xf32>
    %37 = arith.addf %35, %36 : vector<16x256xf32>
    %38 = vector.shape_cast %37 : vector<16x256xf32> to vector<2x8x256xf32>
    %c0_20 = arith.constant 0 : index
    %c0_21 = arith.constant 0 : index
    %39 = vector.load %arg9[%c0_20, %c0_21] : memref<1x256xf32, #tpu.memory_space<vmem>>, vector<1x256xf32>
    %40 = vector.shape_cast %39 : vector<1x256xf32> to vector<1x1x256xf32>
    %41 = vector.broadcast %40 : vector<1x1x256xf32> to vector<2x8x256xf32>
    %42 = arith.mulf %38, %41 : vector<2x8x256xf32>
    %cst_22 = arith.constant dense<0.000000e+00> : vector<2x8xf32>
    %43 = vector.multi_reduction <add>, %42, %cst_22 [2] : vector<2x8x256xf32> to vector<2x8xf32>
    %c0_23 = arith.constant 0 : index
    %c0_24 = arith.constant 0 : index
    %44 = vector.load %arg10[%c0_23, %c0_24] : memref<1x1xf32, #tpu.memory_space<vmem>>, vector<1x1xf32>
    %45 = vector.broadcast %44 : vector<1x1xf32> to vector<2x8xf32>
    %46 = arith.addf %43, %45 : vector<2x8xf32>
    %cst_25 = arith.constant 5.000000e-01 : f32
    %47 = vector.broadcast %cst_25 : f32 to vector<2x8xf32>
    %48 = arith.mulf %47, %46 : vector<2x8xf32>
    %49 = math.tanh %48 : vector<2x8xf32>
    %cst_26 = arith.constant 5.000000e-01 : f32
    %50 = vector.broadcast %cst_26 : f32 to vector<2x8xf32>
    %51 = arith.mulf %50, %49 : vector<2x8xf32>
    %cst_27 = arith.constant 5.000000e-01 : f32
    %52 = vector.broadcast %cst_27 : f32 to vector<2x8xf32>
    %53 = arith.addf %51, %52 : vector<2x8xf32>
    %c0_28 = arith.constant 0 : index
    %c0_29 = arith.constant 0 : index
    %54 = vector.load %arg11[%c0_28, %c0_29] : memref<2x8xf32, #tpu.memory_space<vmem>>, vector<2x8xf32>
    tpu.vector_store %arg11[%c0_28, %c0_29], %53 {strides = array<i32>} : memref<2x8xf32, #tpu.memory_space<vmem>>, vector<2x8xf32>,
    return
  }
  func.func @transform_0(%arg0: i32, %arg1: i32) -> (i32, i32) {
    %c0_i32 = arith.constant 0 : i32
    %c0_i32_0 = arith.constant 0 : i32
    return %arg0, %c0_i32 : i32, i32
  }
  func.func @transform_1(%arg0: i32, %arg1: i32) -> (i32, i32) {
    %c0_i32 = arith.constant 0 : i32
    %c0_i32_0 = arith.constant 0 : i32
    return %arg1, %c0_i32 : i32, i32
  }
  func.func @transform_2(%arg0: i32, %arg1: i32) -> (i32, i32) {
    %c0_i32 = arith.constant 0 : i32
    %c0_i32_0 = arith.constant 0 : i32
    return %arg1, %c0_i32 : i32, i32
  }
  func.func @transform_3(%arg0: i32, %arg1: i32) -> (i32, i32) {
    %c0_i32 = arith.constant 0 : i32
    %c0_i32_0 = arith.constant 0 : i32
    %c0_i32_1 = arith.constant 0 : i32
    return %c0_i32, %c0_i32_0 : i32, i32
  }
  func.func @transform_4(%arg0: i32, %arg1: i32) -> (i32, i32) {
    %c0_i32 = arith.constant 0 : i32
    %c0_i32_0 = arith.constant 0 : i32
    %c0_i32_1 = arith.constant 0 : i32
    return %c0_i32, %c0_i32_0 : i32, i32
  }
  func.func @transform_5(%arg0: i32, %arg1: i32) -> (i32, i32) {
    %c0_i32 = arith.constant 0 : i32
    %c0_i32_0 = arith.constant 0 : i32
    %c0_i32_1 = arith.constant 0 : i32
    return %c0_i32, %c0_i32_0 : i32, i32
  }
  func.func @transform_6(%arg0: i32, %arg1: i32) -> (i32, i32) {
    %c0_i32 = arith.constant 0 : i32
    %c0_i32_0 = arith.constant 0 : i32
    %c0_i32_1 = arith.constant 0 : i32
    return %c0_i32, %c0_i32_0 : i32, i32
  }
  func.func @transform_7(%arg0: i32, %arg1: i32) -> (i32, i32) {
    %c0_i32 = arith.constant 0 : i32
    %c0_i32_0 = arith.constant 0 : i32
    %c0_i32_1 = arith.constant 0 : i32
    return %c0_i32, %c0_i32_0 : i32, i32
  }
  func.func @transform_8(%arg0: i32, %arg1: i32) -> (i32, i32) {
    %c0_i32 = arith.constant 0 : i32
    %c0_i32_0 = arith.constant 0 : i32
    %c0_i32_1 = arith.constant 0 : i32
    return %c0_i32, %c0_i32_0 : i32, i32
  }
  func.func @transform_9(%arg0: i32, %arg1: i32) -> (i32, i32) {
    %c0_i32 = arith.constant 0 : i32
    return %arg0, %arg1 : i32, i32
  }
}

module attributes {stable_mosaic.version = 11 : i64} {
  func.func @ncd_kernel(%arg0: i32, %arg1: i32, %arg2: memref<2x32xf32, #tpu.memory_space<vmem>>, %arg3: memref<8x32xf32, #tpu.memory_space<vmem>>, %arg4: memref<8x32xf32, #tpu.memory_space<vmem>>, %arg5: memref<32x512xbf16, #tpu.memory_space<vmem>>, %arg6: memref<1x512xf32, #tpu.memory_space<vmem>>, %arg7: memref<512x256xbf16, #tpu.memory_space<vmem>>, %arg8: memref<1x256xf32, #tpu.memory_space<vmem>>, %arg9: memref<1x256xf32, #tpu.memory_space<vmem>>, %arg10: memref<1x1xf32, #tpu.memory_space<vmem>>, %arg11: memref<2x8xf32, #tpu.memory_space<vmem>>) attributes {dimension_semantics = [#tpu.dimension_semantics<parallel>, #tpu.dimension_semantics<parallel>], iteration_bounds = array<i64: 1, 1>, scalar_prefetch = 0 : i64, scratch_operands = 0 : i64, tpu.core_type = #tpu.core_type<tc>, window_params = [{transform_indices = @transform_0, window_bounds = array<i64: 2, 32>}, {transform_indices = @transform_1, window_bounds = array<i64: 8, 32>}, {transform_indices = @transform_2, window_bounds = array<i64: 8, 32>}, {pipeline_mode = #tpu.pipeline_mode<synchronous>, transform_indices = @transform_3, window_bounds = array<i64: 32, 512>}, {pipeline_mode = #tpu.pipeline_mode<synchronous>, transform_indices = @transform_4, window_bounds = array<i64: 1, 512>}, {pipeline_mode = #tpu.pipeline_mode<synchronous>, transform_indices = @transform_5, window_bounds = array<i64: 512, 256>}, {pipeline_mode = #tpu.pipeline_mode<synchronous>, transform_indices = @transform_6, window_bounds = array<i64: 1, 256>}, {pipeline_mode = #tpu.pipeline_mode<synchronous>, transform_indices = @transform_7, window_bounds = array<i64: 1, 256>}, {pipeline_mode = #tpu.pipeline_mode<synchronous>, transform_indices = @transform_8, window_bounds = array<i64: 1, 1>}, {transform_indices = @transform_9, window_bounds = array<i64: 2, 8>}]} {
    %c0 = arith.constant 0 : index
    %c0_0 = arith.constant 0 : index
    %0 = vector.load %arg2[%c0, %c0_0] : memref<2x32xf32, #tpu.memory_space<vmem>>, vector<2x32xf32>
    %c0_1 = arith.constant 0 : index
    %c0_2 = arith.constant 0 : index
    %1 = vector.load %arg3[%c0_1, %c0_2] : memref<8x32xf32, #tpu.memory_space<vmem>>, vector<8x32xf32>
    %c0_3 = arith.constant 0 : index
    %c0_4 = arith.constant 0 : index
    %2 = vector.load %arg4[%c0_3, %c0_4] : memref<8x32xf32, #tpu.memory_space<vmem>>, vector<8x32xf32>
    %3 = vector.shape_cast %0 : vector<2x32xf32> to vector<2x1x32xf32>
    %4 = vector.shape_cast %1 : vector<8x32xf32> to vector<1x8x32xf32>
    %5 = vector.broadcast %3 : vector<2x1x32xf32> to vector<2x8x32xf32>
    %6 = vector.broadcast %4 : vector<1x8x32xf32> to vector<2x8x32xf32>
    %7 = arith.subf %5, %6 : vector<2x8x32xf32>
    %8 = vector.shape_cast %2 : vector<8x32xf32> to vector<1x8x32xf32>
    %9 = vector.broadcast %8 : vector<1x8x32xf32> to vector<2x8x32xf32>
    %10 = arith.mulf %7, %9 : vector<2x8x32xf32>
    %11 = vector.shape_cast %10 : vector<2x8x32xf32> to vector<16x32xf32>
    %12 = arith.truncf %11 : vector<16x32xf32> to vector<16x32xbf16>
    %c0_5 = arith.constant 0 : index
    %c0_6 = arith.constant 0 : index
    %13 = vector.load %arg5[%c0_5, %c0_6] : memref<32x512xbf16, #tpu.memory_space<vmem>>, vector<32x512xbf16>
    %cst = arith.constant dense<0.000000e+00> : vector<16x512xf32>
    %14 = tpu.matmul %12, %13, %cst {dimension_numbers = #tpu.dot_dimension_numbers<[1], [0], [0], [1], [0, 0, 1, 1], [], []>} : vector<16x32xbf16>, vector<32x512xbf16>, vector<16x512xf32> -> vector<16x512xf32>
    %c0_7 = arith.constant 0 : index
    %c0_8 = arith.constant 0 : index
    %15 = vector.load %arg6[%c0_7, %c0_8] : memref<1x512xf32, #tpu.memory_space<vmem>>, vector<1x512xf32>
    %16 = vector.broadcast %15 : vector<1x512xf32> to vector<16x512xf32>
    %17 = arith.addf %14, %16 : vector<16x512xf32>
    %cst_9 = arith.constant 5.000000e-01 : f32
    %18 = vector.broadcast %cst_9 : f32 to vector<16x512xf32>
    %19 = arith.mulf %18, %17 : vector<16x512xf32>
    %20 = math.tanh %19 : vector<16x512xf32>
    %cst_10 = arith.constant 5.000000e-01 : f32
    %21 = vector.broadcast %cst_10 : f32 to vector<16x512xf32>
    %22 = arith.mulf %21, %20 : vector<16x512xf32>
    %cst_11 = arith.constant 5.000000e-01 : f32
    %23 = vector.broadcast %cst_11 : f32 to vector<16x512xf32>
    %24 = arith.addf %22, %23 : vector<16x512xf32>
    %25 = arith.truncf %24 : vector<16x512xf32> to vector<16x512xbf16>
    %c0_12 = arith.constant 0 : index
    %c0_13 = arith.constant 0 : index
    %26 = vector.load %arg7[%c0_12, %c0_13] : memref<512x256xbf16, #tpu.memory_space<vmem>>, vector<512x256xbf16>
    %cst_14 = arith.constant dense<0.000000e+00> : vector<16x256xf32>
    %27 = tpu.matmul %25, %26, %cst_14 {dimension_numbers = #tpu.dot_dimension_numbers<[1], [0], [0], [1], [0, 0, 1, 1], [], []>} : vector<16x512xbf16>, vector<512x256xbf16>, vector<16x256xf32> -> vector<16x256xf32>
    %c0_15 = arith.constant 0 : index
    %c0_16 = arith.constant 0 : index
    %28 = vector.load %arg8[%c0_15, %c0_16] : memref<1x256xf32, #tpu.memory_space<vmem>>, vector<1x256xf32>
    %29 = vector.broadcast %28 : vector<1x256xf32> to vector<16x256xf32>
    %30 = arith.addf %27, %29 : vector<16x256xf32>
    %cst_17 = arith.constant 5.000000e-01 : f32
    %31 = vector.broadcast %cst_17 : f32 to vector<16x256xf32>
    %32 = arith.mulf %31, %30 : vector<16x256xf32>
    %33 = math.tanh %32 : vector<16x256xf32>
    %cst_18 = arith.constant 5.000000e-01 : f32
    %34 = vector.broadcast %cst_18 : f32 to vector<16x256xf32>
    %35 = arith.mulf %34, %33 : vector<16x256xf32>
    %cst_19 = arith.constant 5.000000e-01 : f32
    %36 = vector.broadcast %cst_19 : f32 to vector<16x256xf32>
    %37 = arith.addf %35, %36 : vector<16x256xf32>
    %38 = vector.shape_cast %37 : vector<16x256xf32> to vector<2x8x256xf32>
    %c0_20 = arith.constant 0 : index
    %c0_21 = arith.constant 0 : index
    %39 = vector.load %arg9[%c0_20, %c0_21] : memref<1x256xf32, #tpu.memory_space<vmem>>, vector<1x256xf32>
    %40 = vector.shape_cast %39 : vector<1x256xf32> to vector<1x1x256xf32>
    %41 = vector.broadcast %40 : vector<1x1x256xf32> to vector<2x8x256xf32>
    %42 = arith.mulf %38, %41 : vector<2x8x256xf32>
    %cst_22 = arith.constant dense<0.000000e+00> : vector<2x8xf32>
    %43 = vector.multi_reduction <add>, %42, %cst_22 [2] : vector<2x8x256xf32> to vector<2x8xf32>
    %c0_23 = arith.constant 0 : index
    %c0_24 = arith.constant 0 : index
    %44 = vector.load %arg10[%c0_23, %c0_24] : memref<1x1xf32, #tpu.memory_space<vmem>>, vector<1x1xf32>
    %45 = vector.broadcast %44 : vector<1x1xf32> to vector<2x8xf32>
    %46 = arith.addf %43, %45 : vector<2x8xf32>
    %cst_25 = arith.constant 5.000000e-01 : f32
    %47 = vector.broadcast %cst_25 : f32 to vector<2x8xf32>
    %48 = arith.mulf %47, %46 : vector<2x8xf32>
    %49 = math.tanh %48 : vector<2x8xf32>
    %cst_26 = arith.constant 5.000000e-01 : f32
    %50 = vector.broadcast %cst_26 : f32 to vector<2x8xf32>
    %51 = arith.mulf %50, %49 : vector<2x8xf32>
    %cst_27 = arith.constant 5.000000e-01 : f32
    %52 = vector.broadcast %cst_27 : f32 to vector<2x8xf32>
    %53 = arith.addf %51, %52 : vector<2x8xf32>
    %c0_28 = arith.constant 0 : index
    %c0_29 = arith.constant 0 : index
    %54 = vector.load %arg11[%c0_28, %c0_29] : memref<2x8xf32, #tpu.memory_space<vmem>>, vector<2x8xf32>
    tpu.vector_store %arg11[%c0_28, %c0_29], %53 {strides = array<i32>} : memref<2x8xf32, #tpu.memory_space<vmem>>, vector<2x8xf32>,
    return
  }
  func.func @transform_0(%arg0: i32, %arg1: i32) -> (i32, i32) {
    %c0_i32 = arith.constant 0 : i32
    %c0_i32_0 = arith.constant 0 : i32
    return %arg0, %c0_i32 : i32, i32
  }
  func.func @transform_1(%arg0: i32, %arg1: i32) -> (i32, i32) {
    %c0_i32 = arith.constant 0 : i32
    %c0_i32_0 = arith.constant 0 : i32
    return %arg1, %c0_i32 : i32, i32
  }
  func.func @transform_2(%arg0: i32, %arg1: i32) -> (i32, i32) {
    %c0_i32 = arith.constant 0 : i32
    %c0_i32_0 = arith.constant 0 : i32
    return %arg1, %c0_i32 : i32, i32
  }
  func.func @transform_3(%arg0: i32, %arg1: i32) -> (i32, i32) {
    %c0_i32 = arith.constant 0 : i32
    %c0_i32_0 = arith.constant 0 : i32
    %c0_i32_1 = arith.constant 0 : i32
    return %c0_i32, %c0_i32_0 : i32, i32
  }
  func.func @transform_4(%arg0: i32, %arg1: i32) -> (i32, i32) {
    %c0_i32 = arith.constant 0 : i32
    %c0_i32_0 = arith.constant 0 : i32
    %c0_i32_1 = arith.constant 0 : i32
    return %c0_i32, %c0_i32_0 : i32, i32
  }
  func.func @transform_5(%arg0: i32, %arg1: i32) -> (i32, i32) {
    %c0_i32 = arith.constant 0 : i32
    %c0_i32_0 = arith.constant 0 : i32
    %c0_i32_1 = arith.constant 0 : i32
    return %c0_i32, %c0_i32_0 : i32, i32
  }
  func.func @transform_6(%arg0: i32, %arg1: i32) -> (i32, i32) {
    %c0_i32 = arith.constant 0 : i32
    %c0_i32_0 = arith.constant 0 : i32
    %c0_i32_1 = arith.constant 0 : i32
    return %c0_i32, %c0_i32_0 : i32, i32
  }
  func.func @transform_7(%arg0: i32, %arg1: i32) -> (i32, i32) {
    %c0_i32 = arith.constant 0 : i32
    %c0_i32_0 = arith.constant 0 : i32
    %c0_i32_1 = arith.constant 0 : i32
    return %c0_i32, %c0_i32_0 : i32, i32
  }
  func.func @transform_8(%arg0: i32, %arg1: i32) -> (i32, i32) {
    %c0_i32 = arith.constant 0 : i32
    %c0_i32_0 = arith.constant 0 : i32
    %c0_i32_1 = arith.constant 0 : i32
    return %c0_i32, %c0_i32_0 : i32, i32
  }
  func.func @transform_9(%arg0: i32, %arg1: i32) -> (i32, i32) {
    %c0_i32 = arith.constant 0 : i32
    return %arg0, %arg1 : i32, i32
  }
}

</mosaic_0001>

<llo_original>
// kernel: tpu_custom_call.1
$region0: #{tpu_custom_call.1}
  #allocation0 [shape = 'u32[]', space=smem, size = 0x4, offset = 0x4, fixed_abs, tag = 'smem constant byte address 0x4 - core index']
  #allocation1 [shape = 'u32[72,128]{1,0:T(1,128)}', space=vmem, size = 0x9000, scoped, tag = 'internal scratch']
  #allocation2 [shape = 'f32[1,1]{1,0:T(1,128)S(1)}', space=vmem, size = 0x200, scoped, tag = 'scoped memory for tpu_custom_call.1']
  %s0 = inlined_call_operand.hbm [shape: f32[2,32], index: 0, kind: input, shape index: {}]
  %s1 = inlined_call_operand.hbm [shape: f32[8,32], index: 1, kind: input, shape index: {}]
  %s2 = inlined_call_operand.hbm [shape: f32[8,32], index: 2, kind: input, shape index: {}]
  %s3 = inlined_call_operand.hbm [shape: bf16[32,512], index: 3, kind: input, shape index: {}]
  %s4 = inlined_call_operand.vmem [shape: f32[1,512], index: 4, kind: input, shape index: {}]
  %s5 = inlined_call_operand.hbm [shape: bf16[512,256], index: 5, kind: input, shape index: {}]
  %s6 = inlined_call_operand.vmem [shape: f32[1,256], index: 6, kind: input, shape index: {}]
  %s7 = inlined_call_operand.vmem [shape: f32[1,256], index: 7, kind: input, shape index: {}]
  %s8 = inlined_call_operand.<no memory space> [shape: f32[1,1], index: 8, kind: input, shape index: {}]
  %s9 = inlined_call_operand.hbm [shape: f32[2,8], index: 9, kind: output, shape index: {}]
  %s10 = sld [smem:[#allocation0]]
  $region66: #{tpu_custom_call.1} parent=0
    _
  %s12 = ssub.s32 1, %s10
  %s13 = scalar_select 0, %s12, %s10
  %v14 = vstv %s8
  %15 = vst [vmem:[#allocation2] sm:$0x1] %v14
  $region1: #{tpu_custom_call.1} parent=0
    #allocation3 [shape = 'u8[1024]{0}', space=vmem, size = 0x400, scoped, tag = 'input window, operand 0, single buffered']
    #allocation4 [shape = 's32[1]{0}', space=sflag, size = 0x4, scoped, tag = 'scoped memory for tpu_custom_call.1']
    #allocation5 [shape = 's32[1]{0}', space=sflag, size = 0x4, scoped, tag = 'scoped memory for tpu_custom_call.1']
    #allocation6 [shape = 'u8[4096]{0}', space=vmem, size = 0x1000, scoped, tag = 'input window, operand 1, single buffered']
    #allocation7 [shape = 's32[1]{0}', space=sflag, size = 0x4, scoped, tag = 'scoped memory for tpu_custom_call.1']
    #allocation8 [shape = 'u8[4096]{0}', space=vmem, size = 0x1000, scoped, tag = 'input window, operand 2, single buffered']
    #allocation9 [shape = 'u8[32768]{0}', space=vmem, size = 0x8000, scoped, tag = 'input window, operand 3, single buffered']
    #allocation10 [shape = 's32[1]{0}', space=sflag, size = 0x4, scoped, tag = 'scoped memory for tpu_custom_call.1']
    #allocation11 [shape = 'u8[262144]{0}', space=vmem, size = 0x40000, scoped, tag = 'input window, operand 5, single buffered']
    #allocation12 [shape = 'u8[1024]{0}', space=vmem, size = 0x400, scoped, tag = 'output window, operand 0, single buffered']
    %16 = vsyncpa [#allocation4], 0
    %17 = vsyncpa [#allocation7], 0
    %18 = vsyncpa [#allocation10], 0
    %19 = vsyncpa [#allocation5], 0
    // Predicated region
    $region2: #{tpu_custom_call.1} parent=1 // pred_check
      _
    $region3: #{tpu_custom_call.1} parent=1 // pred_check_branch
      %21 = sbr.rel (0) target = $region5
    $region4: #{tpu_custom_call.1} parent=1 // pred_region
      %23 = vsyncadd [#allocation4], 0
      %s25 = sshll.u32 %s0, 4
      %s26 = int_to_ptr.hbm [resolvable:$true] %s25
      %s27 = sshll.u32 [#allocation3], 4
      %s28 = int_to_ptr.vmem [resolvable:$true] %s27
      %30 = dma.hbm_to_vmem [thread:$0]  %s26, 32, %s28, [#allocation4]
    $region5: #{tpu_custom_call.1} parent=1 // pred_fallthru
      _
    // Predicated region
    $region6: #{tpu_custom_call.1} parent=1 // pred_check
      _
    $region7: #{tpu_custom_call.1} parent=1 // pred_check_branch
      %32 = sbr.rel (0) target = $region9
    $region8: #{tpu_custom_call.1} parent=1 // pred_region
      %34 = vsyncadd [#allocation7], 0
      %s36 = sshll.u32 %s1, 4
      %s37 = int_to_ptr.hbm [resolvable:$true] %s36
      %s38 = sshll.u32 [#allocation6], 4
      %s39 = int_to_ptr.vmem [resolvable:$true] %s38
      %41 = dma.hbm_to_vmem [thread:$0]  %s37, 128, %s39, [#allocation7]
    $region9: #{tpu_custom_call.1} parent=1 // pred_fallthru
      _
    // Predicated region
    $region10: #{tpu_custom_call.1} parent=1 // pred_check
      _
    $region11: #{tpu_custom_call.1} parent=1 // pred_check_branch
      %43 = sbr.rel (0) target = $region13
    $region12: #{tpu_custom_call.1} parent=1 // pred_region
      %45 = vsyncadd [#allocation7], 0
      %s47 = sshll.u32 %s2, 4
      %s48 = int_to_ptr.hbm [resolvable:$true] %s47
      %s49 = sshll.u32 [#allocation8], 4
      %s50 = int_to_ptr.vmem [resolvable:$true] %s49
      %52 = dma.hbm_to_vmem [thread:$0]  %s48, 128, %s50, [#allocation7]
    $region13: #{tpu_custom_call.1} parent=1 // pred_fallthru
      _
    // Predicated region
    $region14: #{tpu_custom_call.1} parent=1 // pred_check
      _
    $region15: #{tpu_custom_call.1} parent=1 // pred_check_branch
      %54 = sbr.rel (0) target = $region17
    $region16: #{tpu_custom_call.1} parent=1 // pred_region
      %56 = vsyncadd [#allocation10], 0
      %s57 = sshll.u32 %s3, 4
      %s58 = int_to_ptr.hbm [resolvable:$true] %s57
      %s59 = sshll.u32 [#allocation9], 4
      %s60 = int_to_ptr.vmem [resolvable:$true] %s59
      %65 = dma.hbm_to_vmem [thread:$0]  %s58, 1024, %s60, [#allocation10], 256, 256, 16
    $region17: #{tpu_custom_call.1} parent=1 // pred_fallthru
      _
    // Predicated region
    $region18: #{tpu_custom_call.1} parent=1 // pred_check
      _
    $region19: #{tpu_custom_call.1} parent=1 // pred_check_branch
      %67 = sbr.rel (0) target = $region21
    $region20: #{tpu_custom_call.1} parent=1 // pred_region
      _
    $region21: #{tpu_custom_call.1} parent=1 // pred_fallthru
      _
    // Predicated region
    $region22: #{tpu_custom_call.1} parent=1 // pred_check
      _
    $region23: #{tpu_custom_call.1} parent=1 // pred_check_branch
      %69 = sbr.rel (0) target = $region25
    $region24: #{tpu_custom_call.1} parent=1 // pred_region
      %71 = vsyncadd [#allocation10], 0
      %s72 = sshll.u32 %s5, 4
      %s73 = int_to_ptr.hbm [resolvable:$true] %s72
      %s74 = sshll.u32 [#allocation11], 4
      %s75 = int_to_ptr.vmem [resolvable:$true] %s74
      %80 = dma.hbm_to_vmem [thread:$0]  %s73, 8192, %s75, [#allocation10], 128, 128, 8
    $region25: #{tpu_custom_call.1} parent=1 // pred_fallthru
      _
    // Predicated region
    $region26: #{tpu_custom_call.1} parent=1 // pred_check
      _
    $region27: #{tpu_custom_call.1} parent=1 // pred_check_branch
      %82 = sbr.rel (0) target = $region29
    $region28: #{tpu_custom_call.1} parent=1 // pred_region
      _
    $region29: #{tpu_custom_call.1} parent=1 // pred_fallthru
      _
    // Predicated region
    $region30: #{tpu_custom_call.1} parent=1 // pred_check
      _
    $region31: #{tpu_custom_call.1} parent=1 // pred_check_branch
      %84 = sbr.rel (0) target = $region33
    $region32: #{tpu_custom_call.1} parent=1 // pred_region
      _
    $region33: #{tpu_custom_call.1} parent=1 // pred_fallthru
      _
    // Predicated region
    $region34: #{tpu_custom_call.1} parent=1 // pred_check
      _
    $region35: #{tpu_custom_call.1} parent=1 // pred_check_branch
      %86 = sbr.rel (0) target = $region37
    $region36: #{tpu_custom_call.1} parent=1 // pred_region
      _
    $region37: #{tpu_custom_call.1} parent=1 // pred_fallthru
      _
    // Predicated region
    $region38: #{tpu_custom_call.1} parent=1 // pred_check
      _
    $region39: #{tpu_custom_call.1} parent=1 // pred_check_branch
      %88 = sbr.rel (0) target = $region41
    $region40: #{tpu_custom_call.1} parent=1 // pred_region
      %90 = dma.done [#allocation4], 32
    $region41: #{tpu_custom_call.1} parent=1 // pred_fallthru
      _
    // Predicated region
    $region42: #{tpu_custom_call.1} parent=1 // pred_check
      _
    $region43: #{tpu_custom_call.1} parent=1 // pred_check_branch
      %92 = sbr.rel (0) target = $region45
    $region44: #{tpu_custom_call.1} parent=1 // pred_region
      %94 = dma.done [#allocation7], 128
    $region45: #{tpu_custom_call.1} parent=1 // pred_fallthru
      _
    // Predicated region
    $region46: #{tpu_custom_call.1} parent=1 // pred_check
      _
    $region47: #{tpu_custom_call.1} parent=1 // pred_check_branch
      %96 = sbr.rel (0) target = $region49
    $region48: #{tpu_custom_call.1} parent=1 // pred_region
      %98 = dma.done [#allocation7], 128
    $region49: #{tpu_custom_call.1} parent=1 // pred_fallthru
      _
    // Predicated region
    $region50: #{tpu_custom_call.1} parent=1 // pred_check
      _
    $region51: #{tpu_custom_call.1} parent=1 // pred_check_branch
      %100 = sbr.rel (0) target = $region53
    $region52: #{tpu_custom_call.1} parent=1 // pred_region
      %102 = dma.done [#allocation10], 1024
    $region53: #{tpu_custom_call.1} parent=1 // pred_fallthru
      _
    // Predicated region
    $region54: #{tpu_custom_call.1} parent=1 // pred_check
      _
    $region55: #{tpu_custom_call.1} parent=1 // pred_check_branch
      %104 = sbr.rel (0) target = $region57
    $region56: #{tpu_custom_call.1} parent=1 // pred_region
      %106 = dma.done [#allocation10], 8192
    $region57: #{tpu_custom_call.1} parent=1 // pred_fallthru
      _
    %v108 = vld [vmem:[#allocation3] sm:$0x3]
    %v109 = vld [vmem:[#allocation6] sm:$0xff]
    %v110 = vld [vmem:[#allocation8] sm:$0xff]
    %v112 = vrot.slane %v108, 1
    %v113 = vperm.slane %v108, 0
    %v114 = vperm.slane %v112, 0
    %v117 = vsub.f32 %v113, %v109
    %v118 = vsub.f32 %v114, %v109
    %v119 = vmul.f32 %v117, %v110
    %v120 = vmul.f32 %v118, %v110
    %v121 = vpack.c.bf16 %v120, %v119
    %v122 = vld [vmem:[#allocation9] sm:$0xff]
    %v123 = vld [vmem:[#allocation9 + $0x8] sm:$0xff]
    %v124 = vld [vmem:[#allocation9 + $0x10] sm:$0xff]
    %v125 = vld [vmem:[#allocation9 + $0x18] sm:$0xff]
    %v126 = vld [vmem:[#allocation9 + $0x20] sm:$0xff]
    %v127 = vld [vmem:[#allocation9 + $0x28] sm:$0xff]
    %v128 = vld [vmem:[#allocation9 + $0x30] sm:$0xff]
    %v129 = vld [vmem:[#allocation9 + $0x38] sm:$0xff]
    %v130 = vld [vmem:[%s4] sm:$0xf]
    %v132 = vperm.slane %v130, 0
    %v133 = vperm.slane %v130, 1
    %v134 = vperm.slane %v130, 2
    %v135 = vperm.slane %v130, 3
    %v148 = vunpack.c.l.b16 %v122
    %v149 = vunpack.c.h.b16 %v122
    %v150 = vunpack.c.l.b16 %v123
    %v151 = vunpack.c.h.b16 %v123
    %v152 = vunpack.c.l.b16 %v124
    %v153 = vunpack.c.h.b16 %v124
    %v154 = vunpack.c.l.b16 %v125
    %v155 = vunpack.c.h.b16 %v125
    %v156 = vunpack.c.l.b16 %v126
    %v157 = vunpack.c.h.b16 %v126
    %v158 = vunpack.c.l.b16 %v127
    %v159 = vunpack.c.h.b16 %v127
    %v160 = vunpack.c.l.b16 %v128
    %v161 = vunpack.c.h.b16 %v128
    %v162 = vunpack.c.l.b16 %v129
    %v163 = vunpack.c.h.b16 %v129
    %v164 = vpack.c.b16 %v152, %v148
    %v165 = vpack.c.b16 %v153, %v149
    %v166 = vpack.c.b16 %v154, %v150
    %v167 = vpack.c.b16 %v155, %v151
    %v168 = vpack.c.b16 %v160, %v156
    %v169 = vpack.c.b16 %v161, %v157
    %v170 = vpack.c.b16 %v162, %v158
    %v171 = vpack.c.b16 %v163, %v159
    %vm180 = vcmask 261120
    %v182 = vsel %vm180, %v121, 0
    %184 = vmatpush.bf16.msra.mxu0 0
    %185 = vmatpush.bf16.msra.mxu0 0
    %186 = vmatpush.bf16.msra.mxu0 0
    %187 = vmatpush.bf16.msra.mxu0 0
    %188 = vmatpush.bf16.msra.mxu0 0
    %189 = vmatpush.bf16.msra.mxu0 0
    %190 = vmatpush.bf16.msra.mxu0 %v168
    %191 = vmatpush.bf16.msra.mxu0 %v164
    %192 = vmatmul.bf16.gmra.mxu0 %v182
    %v193 = vpop.f32.mrf.mxu0
    %v194 = vadd.f32 %v132, %v193
    %v195 = vpop.f32.mrf.mxu0
    %v196 = vadd.f32 %v132, %v195
    %197 = vdwg.mxu0
    %198 = vmatpush.bf16.msra.mxu0 0
    %199 = vmatpush.bf16.msra.mxu0 0
    %200 = vmatpush.bf16.msra.mxu0 0
    %201 = vmatpush.bf16.msra.mxu0 0
    %202 = vmatpush.bf16.msra.mxu0 0
    %203 = vmatpush.bf16.msra.mxu0 0
    %204 = vmatpush.bf16.msra.mxu0 %v169
    %205 = vmatpush.bf16.msra.mxu0 %v165
    %206 = vmatmul.bf16.gmra.mxu0 %v182
    %v207 = vpop.f32.mrf.mxu0
    %v208 = vadd.f32 %v133, %v207
    %v209 = vpop.f32.mrf.mxu0
    %v210 = vadd.f32 %v133, %v209
    %211 = vdwg.mxu0
    %212 = vmatpush.bf16.msra.mxu0 0
    %213 = vmatpush.bf16.msra.mxu0 0
    %214 = vmatpush.bf16.msra.mxu0 0
    %215 = vmatpush.bf16.msra.mxu0 0
    %216 = vmatpush.bf16.msra.mxu0 0
    %217 = vmatpush.bf16.msra.mxu0 0
    %218 = vmatpush.bf16.msra.mxu0 %v170
    %219 = vmatpush.bf16.msra.mxu0 %v166
    %220 = vmatmul.bf16.gmra.mxu0 %v182
    %v221 = vpop.f32.mrf.mxu0
    %v222 = vadd.f32 %v134, %v221
    %v223 = vpop.f32.mrf.mxu0
    %v224 = vadd.f32 %v134, %v223
    %225 = vdwg.mxu0
    %226 = vmatpush.bf16.msra.mxu0 0
    %227 = vmatpush.bf16.msra.mxu0 0
    %228 = vmatpush.bf16.msra.mxu0 0
    %229 = vmatpush.bf16.msra.mxu0 0
    %230 = vmatpush.bf16.msra.mxu0 0
    %231 = vmatpush.bf16.msra.mxu0 0
    %232 = vmatpush.bf16.msra.mxu0 %v171
    %233 = vmatpush.bf16.msra.mxu0 %v167
    %234 = vmatmul.bf16.gmra.mxu0 %v182
    %v235 = vpop.f32.mrf.mxu0
    %v236 = vadd.f32 %v135, %v235
    %v237 = vpop.f32.mrf.mxu0
    %v238 = vadd.f32 %v135, %v237
    %239 = vdwg.mxu0
    %v240 = vmul.f32 %v194, 0.5
    %v241 = vmul.f32 %v208, 0.5
    %v242 = vmul.f32 %v222, 0.5
    %v243 = vmul.f32 %v236, 0.5
    %v244 = vmul.f32 %v196, 0.5
    %v245 = vmul.f32 %v210, 0.5
    %v246 = vmul.f32 %v224, 0.5
    %v247 = vmul.f32 %v238, 0.5
    %v248 = vtanh.pop %v240
    %v249 = vtanh.pop %v241
    %v250 = vtanh.pop %v242
    %v251 = vtanh.pop %v243
    %v252 = vtanh.pop %v244
    %v253 = vtanh.pop %v245
    %v254 = vtanh.pop %v246
    %v255 = vtanh.pop %v247
    %v256 = vmul.f32 %v248, 0.5
    %v257 = vmul.f32 %v249, 0.5
    %v258 = vmul.f32 %v250, 0.5
    %v259 = vmul.f32 %v251, 0.5
    %v260 = vmul.f32 %v252, 0.5
    %v261 = vmul.f32 %v253, 0.5
    %v262 = vmul.f32 %v254, 0.5
    %v263 = vmul.f32 %v255, 0.5
    %v264 = vadd.f32 %v256, 0.5
    %v265 = vadd.f32 %v257, 0.5
    %v266 = vadd.f32 %v258, 0.5
    %v267 = vadd.f32 %v259, 0.5
    %v268 = vadd.f32 %v260, 0.5
    %v269 = vadd.f32 %v261, 0.5
    %v270 = vadd.f32 %v262, 0.5
    %v271 = vadd.f32 %v263, 0.5
    %v272 = vpack.c.bf16 %v268, %v264
    %v273 = vpack.c.bf16 %v269, %v265
    %v274 = vpack.c.bf16 %v270, %v266
    %v275 = vpack.c.bf16 %v271, %v267
    %v276 = vld [vmem:[#allocation11] sm:$0xff]
    %v277 = vld [vmem:[#allocation11 + $0x8] sm:$0xff]
    %v278 = vld [vmem:[#allocation11 + $0x10] sm:$0xff]
    %v279 = vld [vmem:[#allocation11 + $0x18] sm:$0xff]
    %v280 = vld [vmem:[#allocation11 + $0x20] sm:$0xff]
    %v281 = vld [vmem:[#allocation11 + $0x28] sm:$0xff]
    %v282 = vld [vmem:[#allocation11 + $0x30] sm:$0xff]
    %v283 = vld [vmem:[#allocation11 + $0x38] sm:$0xff]
    %v284 = vld [vmem:[#allocation11 + $0x40] sm:$0xff]
    %v285 = vld [vmem:[#allocation11 + $0x48] sm:$0xff]
    %v286 = vld [vmem:[#allocation11 + $0x50] sm:$0xff]
    %v287 = vld [vmem:[#allocation11 + $0x58] sm:$0xff]
    %v288 = vld [vmem:[#allocation11 + $0x60] sm:$0xff]
    %v289 = vld [vmem:[#allocation11 + $0x68] sm:$0xff]
    %v290 = vld [vmem:[#allocation11 + $0x70] sm:$0xff]
    %v291 = vld [vmem:[#allocation11 + $0x78] sm:$0xff]
    %v292 = vld [vmem:[#allocation11 + $0x80] sm:$0xff]
    %v293 = vld [vmem:[#allocation11 + $0x88] sm:$0xff]
    %v294 = vld [vmem:[#allocation11 + $0x90] sm:$0xff]
    %v295 = vld [vmem:[#allocation11 + $0x98] sm:$0xff]
    %v296 = vld [vmem:[#allocation11 + $0xa0] sm:$0xff]
    %v297 = vld [vmem:[#allocation11 + $0xa8] sm:$0xff]
    %v298 = vld [vmem:[#allocation11 + $0xb0] sm:$0xff]
    %v299 = vld [vmem:[#allocation11 + $0xb8] sm:$0xff]
    %v300 = vld [vmem:[#allocation11 + $0xc0] sm:$0xff]
    %v301 = vld [vmem:[#allocation11 + $0xc8] sm:$0xff]
    %v302 = vld [vmem:[#allocation11 + $0xd0] sm:$0xff]
    %v303 = vld [vmem:[#allocation11 + $0xd8] sm:$0xff]
    %v304 = vld [vmem:[#allocation11 + $0xe0] sm:$0xff]
    %v305 = vld [vmem:[#allocation11 + $0xe8] sm:$0xff]
    %v306 = vld [vmem:[#allocation11 + $0xf0] sm:$0xff]
    %v307 = vld [vmem:[#allocation11 + $0xf8] sm:$0xff]
    %v308 = vld [vmem:[#allocation11 + $0x100] sm:$0xff]
    %v309 = vld [vmem:[#allocation11 + $0x108] sm:$0xff]
    %v310 = vld [vmem:[#allocation11 + $0x110] sm:$0xff]
    %v311 = vld [vmem:[#allocation11 + $0x118] sm:$0xff]
    %v312 = vld [vmem:[#allocation11 + $0x120] sm:$0xff]
    %v313 = vld [vmem:[#allocation11 + $0x128] sm:$0xff]
    %v314 = vld [vmem:[#allocation11 + $0x130] sm:$0xff]
    %v315 = vld [vmem:[#allocation11 + $0x138] sm:$0xff]
    %v316 = vld [vmem:[#allocation11 + $0x140] sm:$0xff]
    %v317 = vld [vmem:[#allocation11 + $0x148] sm:$0xff]
    %v318 = vld [vmem:[#allocation11 + $0x150] sm:$0xff]
    %v319 = vld [vmem:[#allocation11 + $0x158] sm:$0xff]
    %v320 = vld [vmem:[#allocation11 + $0x160] sm:$0xff]
    %v321 = vld [vmem:[#allocation11 + $0x168] sm:$0xff]
    %v322 = vld [vmem:[#allocation11 + $0x170] sm:$0xff]
    %v323 = vld [vmem:[#allocation11 + $0x178] sm:$0xff]
    %v324 = vld [vmem:[#allocation11 + $0x180] sm:$0xff]
    %v325 = vld [vmem:[#allocation11 + $0x188] sm:$0xff]
    %v326 = vld [vmem:[#allocation11 + $0x190] sm:$0xff]
    %v327 = vld [vmem:[#allocation11 + $0x198] sm:$0xff]
    %v328 = vld [vmem:[#allocation11 + $0x1a0] sm:$0xff]
    %v329 = vld [vmem:[#allocation11 + $0x1a8] sm:$0xff]
    %v330 = vld [vmem:[#allocation11 + $0x1b0] sm:$0xff]
    %v331 = vld [vmem:[#allocation11 + $0x1b8] sm:$0xff]
    %v332 = vld [vmem:[#allocation11 + $0x1c0] sm:$0xff]
    %v333 = vld [vmem:[#allocation11 + $0x1c8] sm:$0xff]
    %v334 = vld [vmem:[#allocation11 + $0x1d0] sm:$0xff]
    %v335 = vld [vmem:[#allocation11 + $0x1d8] sm:$0xff]
    %v336 = vld [vmem:[#allocation11 + $0x1e0] sm:$0xff]
    %v337 = vld [vmem:[#allocation11 + $0x1e8] sm:$0xff]
    %v338 = vld [vmem:[#allocation11 + $0x1f0] sm:$0xff]
    %v339 = vld [vmem:[#allocation11 + $0x1f8] sm:$0xff]
    %v340 = vld [vmem:[%s6] sm:$0x3]
    %v342 = vperm.slane %v340, 0
    %v343 = vperm.slane %v340, 1
    %v410 = vunpack.c.l.b16 %v276
    %v411 = vunpack.c.h.b16 %v276
    %v412 = vunpack.c.l.b16 %v277
    %v413 = vunpack.c.h.b16 %v277
    %v414 = vunpack.c.l.b16 %v278
    %v415 = vunpack.c.h.b16 %v278
    %v416 = vunpack.c.l.b16 %v279
    %v417 = vunpack.c.h.b16 %v279
    %v418 = vunpack.c.l.b16 %v280
    %v419 = vunpack.c.h.b16 %v280
    %v420 = vunpack.c.l.b16 %v281
    %v421 = vunpack.c.h.b16 %v281
    %v422 = vunpack.c.l.b16 %v282
    %v423 = vunpack.c.h.b16 %v282
    %v424 = vunpack.c.l.b16 %v283
    %v425 = vunpack.c.h.b16 %v283
    %v426 = vunpack.c.l.b16 %v284
    %v427 = vunpack.c.h.b16 %v284
    %v428 = vunpack.c.l.b16 %v285
    %v429 = vunpack.c.h.b16 %v285
    %v430 = vunpack.c.l.b16 %v286
    %v431 = vunpack.c.h.b16 %v286
    %v432 = vunpack.c.l.b16 %v287
    %v433 = vunpack.c.h.b16 %v287
    %v434 = vunpack.c.l.b16 %v288
    %v435 = vunpack.c.h.b16 %v288
    %v436 = vunpack.c.l.b16 %v289
    %v437 = vunpack.c.h.b16 %v289
    %v438 = vunpack.c.l.b16 %v290
    %v439 = vunpack.c.h.b16 %v290
    %v440 = vunpack.c.l.b16 %v291
    %v441 = vunpack.c.h.b16 %v291
    %v442 = vunpack.c.l.b16 %v292
    %v443 = vunpack.c.h.b16 %v292
    %v444 = vunpack.c.l.b16 %v293
    %v445 = vunpack.c.h.b16 %v293
    %v446 = vunpack.c.l.b16 %v294
    %v447 = vunpack.c.h.b16 %v294
    %v448 = vunpack.c.l.b16 %v295
    %v449 = vunpack.c.h.b16 %v295
    %v450 = vunpack.c.l.b16 %v296
    %v451 = vunpack.c.h.b16 %v296
    %v452 = vunpack.c.l.b16 %v297
    %v453 = vunpack.c.h.b16 %v297
    %v454 = vunpack.c.l.b16 %v298
    %v455 = vunpack.c.h.b16 %v298
    %v456 = vunpack.c.l.b16 %v299
    %v457 = vunpack.c.h.b16 %v299
    %v458 = vunpack.c.l.b16 %v300
    %v459 = vunpack.c.h.b16 %v300
    %v460 = vunpack.c.l.b16 %v301
    %v461 = vunpack.c.h.b16 %v301
    %v462 = vunpack.c.l.b16 %v302
    %v463 = vunpack.c.h.b16 %v302
    %v464 = vunpack.c.l.b16 %v303
    %v465 = vunpack.c.h.b16 %v303
    %v466 = vunpack.c.l.b16 %v304
    %v467 = vunpack.c.h.b16 %v304
    %v468 = vunpack.c.l.b16 %v305
    %v469 = vunpack.c.h.b16 %v305
    %v470 = vunpack.c.l.b16 %v306
    %v471 = vunpack.c.h.b16 %v306
    %v472 = vunpack.c.l.b16 %v307
    %v473 = vunpack.c.h.b16 %v307
    %v474 = vunpack.c.l.b16 %v308
    %v475 = vunpack.c.h.b16 %v308
    %v476 = vunpack.c.l.b16 %v309
    %v477 = vunpack.c.h.b16 %v309
    %v478 = vunpack.c.l.b16 %v310
    %v479 = vunpack.c.h.b16 %v310
    %v480 = vunpack.c.l.b16 %v311
    %v481 = vunpack.c.h.b16 %v311
    %v482 = vunpack.c.l.b16 %v312
    %v483 = vunpack.c.h.b16 %v312
    %v484 = vunpack.c.l.b16 %v313
    %v485 = vunpack.c.h.b16 %v313
    %v486 = vunpack.c.l.b16 %v314
    %v487 = vunpack.c.h.b16 %v314
    %v488 = vunpack.c.l.b16 %v315
    %v489 = vunpack.c.h.b16 %v315
    %v490 = vunpack.c.l.b16 %v316
    %v491 = vunpack.c.h.b16 %v316
    %v492 = vunpack.c.l.b16 %v317
    %v493 = vunpack.c.h.b16 %v317
    %v494 = vunpack.c.l.b16 %v318
    %v495 = vunpack.c.h.b16 %v318
    %v496 = vunpack.c.l.b16 %v319
    %v497 = vunpack.c.h.b16 %v319
    %v498 = vunpack.c.l.b16 %v320
    %v499 = vunpack.c.h.b16 %v320
    %v500 = vunpack.c.l.b16 %v321
    %v501 = vunpack.c.h.b16 %v321
    %v502 = vunpack.c.l.b16 %v322
    %v503 = vunpack.c.h.b16 %v322
    %v504 = vunpack.c.l.b16 %v323
    %v505 = vunpack.c.h.b16 %v323
    %v506 = vunpack.c.l.b16 %v324
    %v507 = vunpack.c.h.b16 %v324
    %v508 = vunpack.c.l.b16 %v325
    %v509 = vunpack.c.h.b16 %v325
    %v510 = vunpack.c.l.b16 %v326
    %v511 = vunpack.c.h.b16 %v326
    %v512 = vunpack.c.l.b16 %v327
    %v513 = vunpack.c.h.b16 %v327
    %v514 = vunpack.c.l.b16 %v328
    %v515 = vunpack.c.h.b16 %v328
    %v516 = vunpack.c.l.b16 %v329
    %v517 = vunpack.c.h.b16 %v329
    %v518 = vunpack.c.l.b16 %v330
    %v519 = vunpack.c.h.b16 %v330
    %v520 = vunpack.c.l.b16 %v331
    %v521 = vunpack.c.h.b16 %v331
    %v522 = vunpack.c.l.b16 %v332
    %v523 = vunpack.c.h.b16 %v332
    %v524 = vunpack.c.l.b16 %v333
    %v525 = vunpack.c.h.b16 %v333
    %v526 = vunpack.c.l.b16 %v334
    %v527 = vunpack.c.h.b16 %v334
    %v528 = vunpack.c.l.b16 %v335
    %v529 = vunpack.c.h.b16 %v335
    %v530 = vunpack.c.l.b16 %v336
    %v531 = vunpack.c.h.b16 %v336
    %v532 = vunpack.c.l.b16 %v337
    %v533 = vunpack.c.h.b16 %v337
    %v534 = vunpack.c.l.b16 %v338
    %v535 = vunpack.c.h.b16 %v338
    %v536 = vunpack.c.l.b16 %v339
    %v537 = vunpack.c.h.b16 %v339
    %v538 = vpack.c.b16 %v412, %v410
    %v539 = vpack.c.b16 %v413, %v411
    %v540 = vpack.c.b16 %v416, %v414
    %v541 = vpack.c.b16 %v417, %v415
    %v542 = vpack.c.b16 %v420, %v418
    %v543 = vpack.c.b16 %v421, %v419
    %v544 = vpack.c.b16 %v424, %v422
    %v545 = vpack.c.b16 %v425, %v423
    %v546 = vpack.c.b16 %v428, %v426
    %v547 = vpack.c.b16 %v429, %v427
    %v548 = vpack.c.b16 %v432, %v430
    %v549 = vpack.c.b16 %v433, %v431
    %v550 = vpack.c.b16 %v436, %v434
    %v551 = vpack.c.b16 %v437, %v435
    %v552 = vpack.c.b16 %v440, %v438
    %v553 = vpack.c.b16 %v441, %v439
    %v554 = vpack.c.b16 %v444, %v442
    %v555 = vpack.c.b16 %v445, %v443
    %v556 = vpack.c.b16 %v448, %v446
    %v557 = vpack.c.b16 %v449, %v447
    %v558 = vpack.c.b16 %v452, %v450
    %v559 = vpack.c.b16 %v453, %v451
    %v560 = vpack.c.b16 %v456, %v454
    %v561 = vpack.c.b16 %v457, %v455
    %v562 = vpack.c.b16 %v460, %v458
    %v563 = vpack.c.b16 %v461, %v459
    %v564 = vpack.c.b16 %v464, %v462
    %v565 = vpack.c.b16 %v465, %v463
    %v566 = vpack.c.b16 %v468, %v466
    %v567 = vpack.c.b16 %v469, %v467
    %v568 = vpack.c.b16 %v472, %v470
    %v569 = vpack.c.b16 %v473, %v471
    %v570 = vpack.c.b16 %v476, %v474
    %v571 = vpack.c.b16 %v477, %v475
    %v572 = vpack.c.b16 %v480, %v478
    %v573 = vpack.c.b16 %v481, %v479
    %v574 = vpack.c.b16 %v484, %v482
    %v575 = vpack.c.b16 %v485, %v483
    %v576 = vpack.c.b16 %v488, %v486
    %v577 = vpack.c.b16 %v489, %v487
    %v578 = vpack.c.b16 %v492, %v490
    %v579 = vpack.c.b16 %v493, %v491
    %v580 = vpack.c.b16 %v496, %v494
    %v581 = vpack.c.b16 %v497, %v495
    %v582 = vpack.c.b16 %v500, %v498
    %v583 = vpack.c.b16 %v501, %v499
    %v584 = vpack.c.b16 %v504, %v502
    %v585 = vpack.c.b16 %v505, %v503
    %v586 = vpack.c.b16 %v508, %v506
    %v587 = vpack.c.b16 %v509, %v507
    %v588 = vpack.c.b16 %v512, %v510
    %v589 = vpack.c.b16 %v513, %v511
    %v590 = vpack.c.b16 %v516, %v514
    %v591 = vpack.c.b16 %v517, %v515
    %v592 = vpack.c.b16 %v520, %v518
    %v593 = vpack.c.b16 %v521, %v519
    %v594 = vpack.c.b16 %v524, %v522
    %v595 = vpack.c.b16 %v525, %v523
    %v596 = vpack.c.b16 %v528, %v526
    %v597 = vpack.c.b16 %v529, %v527
    %v598 = vpack.c.b16 %v532, %v530
    %v599 = vpack.c.b16 %v533, %v531
    %v600 = vpack.c.b16 %v536, %v534
    %v601 = vpack.c.b16 %v537, %v535
    %666 = vmatpush.bf16.msra.mxu0 %v552
    %667 = vmatpush.bf16.msra.mxu0 %v550
    %668 = vmatpush.bf16.msra.mxu0 %v548
    %669 = vmatpush.bf16.msra.mxu0 %v546
    %670 = vmatpush.bf16.msra.mxu0 %v544
    %671 = vmatpush.bf16.msra.mxu0 %v542
    %672 = vmatpush.bf16.msra.mxu0 %v540
    %673 = vmatpush.bf16.msra.mxu0 %v538
    %674 = vmatmul.bf16.gmra.mxu0 %v272
    %v675 = vpop.f32.mrf.mxu0
    %v676 = vadd.f32 %v342, %v675
    %v677 = vpop.f32.mrf.mxu0
    %v678 = vadd.f32 %v342, %v677
    %679 = vdwg.mxu0
    %680 = vmatpush.bf16.msra.mxu0 %v568
    %681 = vmatpush.bf16.msra.mxu0 %v566
    %682 = vmatpush.bf16.msra.mxu0 %v564
    %683 = vmatpush.bf16.msra.mxu0 %v562
    %684 = vmatpush.bf16.msra.mxu0 %v560
    %685 = vmatpush.bf16.msra.mxu0 %v558
    %686 = vmatpush.bf16.msra.mxu0 %v556
    %687 = vmatpush.bf16.msra.mxu0 %v554
    %688 = vmatmul.bf16.gmra.mxu0 %v273
    %v689 = vpop.f32.mrf.mxu0
    %v690 = vadd.f32 %v676, %v689
    %v691 = vpop.f32.mrf.mxu0
    %v692 = vadd.f32 %v678, %v691
    %693 = vdwg.mxu0
    %694 = vmatpush.bf16.msra.mxu0 %v584
    %695 = vmatpush.bf16.msra.mxu0 %v582
    %696 = vmatpush.bf16.msra.mxu0 %v580
    %697 = vmatpush.bf16.msra.mxu0 %v578
    %698 = vmatpush.bf16.msra.mxu0 %v576
    %699 = vmatpush.bf16.msra.mxu0 %v574
    %700 = vmatpush.bf16.msra.mxu0 %v572
    %701 = vmatpush.bf16.msra.mxu0 %v570
    %702 = vmatmul.bf16.gmra.mxu0 %v274
    %v703 = vpop.f32.mrf.mxu0
    %v704 = vadd.f32 %v690, %v703
    %v705 = vpop.f32.mrf.mxu0
    %v706 = vadd.f32 %v692, %v705
    %707 = vdwg.mxu0
    %708 = vmatpush.bf16.msra.mxu0 %v600
    %709 = vmatpush.bf16.msra.mxu0 %v598
    %710 = vmatpush.bf16.msra.mxu0 %v596
    %711 = vmatpush.bf16.msra.mxu0 %v594
    %712 = vmatpush.bf16.msra.mxu0 %v592
    %713 = vmatpush.bf16.msra.mxu0 %v590
    %714 = vmatpush.bf16.msra.mxu0 %v588
    %715 = vmatpush.bf16.msra.mxu0 %v586
    %716 = vmatmul.bf16.gmra.mxu0 %v275
    %v717 = vpop.f32.mrf.mxu0
    %v718 = vadd.f32 %v704, %v717
    %v719 = vpop.f32.mrf.mxu0
    %v720 = vadd.f32 %v706, %v719
    %721 = vdwg.mxu0
    %722 = vmatpush.bf16.msra.mxu0 %v553
    %723 = vmatpush.bf16.msra.mxu0 %v551
    %724 = vmatpush.bf16.msra.mxu0 %v549
    %725 = vmatpush.bf16.msra.mxu0 %v547
    %726 = vmatpush.bf16.msra.mxu0 %v545
    %727 = vmatpush.bf16.msra.mxu0 %v543
    %728 = vmatpush.bf16.msra.mxu0 %v541
    %729 = vmatpush.bf16.msra.mxu0 %v539
    %730 = vmatmul.bf16.gmra.mxu0 %v272
    %v731 = vpop.f32.mrf.mxu0
    %v732 = vadd.f32 %v343, %v731
    %v733 = vpop.f32.mrf.mxu0
    %v734 = vadd.f32 %v343, %v733
    %735 = vdwg.mxu0
    %736 = vmatpush.bf16.msra.mxu0 %v569
    %737 = vmatpush.bf16.msra.mxu0 %v567
    %738 = vmatpush.bf16.msra.mxu0 %v565
    %739 = vmatpush.bf16.msra.mxu0 %v563
    %740 = vmatpush.bf16.msra.mxu0 %v561
    %741 = vmatpush.bf16.msra.mxu0 %v559
    %742 = vmatpush.bf16.msra.mxu0 %v557
    %743 = vmatpush.bf16.msra.mxu0 %v555
    %744 = vmatmul.bf16.gmra.mxu0 %v273
    %v745 = vpop.f32.mrf.mxu0
    %v746 = vadd.f32 %v732, %v745
    %v747 = vpop.f32.mrf.mxu0
    %v748 = vadd.f32 %v734, %v747
    %749 = vdwg.mxu0
    %750 = vmatpush.bf16.msra.mxu0 %v585
    %751 = vmatpush.bf16.msra.mxu0 %v583
    %752 = vmatpush.bf16.msra.mxu0 %v581
    %753 = vmatpush.bf16.msra.mxu0 %v579
    %754 = vmatpush.bf16.msra.mxu0 %v577
    %755 = vmatpush.bf16.msra.mxu0 %v575
    %756 = vmatpush.bf16.msra.mxu0 %v573
    %757 = vmatpush.bf16.msra.mxu0 %v571
    %758 = vmatmul.bf16.gmra.mxu0 %v274
    %v759 = vpop.f32.mrf.mxu0
    %v760 = vadd.f32 %v746, %v759
    %v761 = vpop.f32.mrf.mxu0
    %v762 = vadd.f32 %v748, %v761
    %763 = vdwg.mxu0
    %764 = vmatpush.bf16.msra.mxu0 %v601
    %765 = vmatpush.bf16.msra.mxu0 %v599
    %766 = vmatpush.bf16.msra.mxu0 %v597
    %767 = vmatpush.bf16.msra.mxu0 %v595
    %768 = vmatpush.bf16.msra.mxu0 %v593
    %769 = vmatpush.bf16.msra.mxu0 %v591
    %770 = vmatpush.bf16.msra.mxu0 %v589
    %771 = vmatpush.bf16.msra.mxu0 %v587
    %772 = vmatmul.bf16.gmra.mxu0 %v275
    %v773 = vpop.f32.mrf.mxu0
    %v774 = vadd.f32 %v760, %v773
    %v775 = vpop.f32.mrf.mxu0
    %v776 = vadd.f32 %v762, %v775
    %777 = vdwg.mxu0
    %v778 = vmul.f32 %v718, 0.5
    %v779 = vmul.f32 %v774, 0.5
    %v780 = vmul.f32 %v720, 0.5
    %v781 = vmul.f32 %v776, 0.5
    %v782 = vtanh.pop %v778
    %v783 = vtanh.pop %v779
    %v784 = vtanh.pop %v780
    %v785 = vtanh.pop %v781
    %v786 = vmul.f32 %v782, 0.5
    %v787 = vmul.f32 %v783, 0.5
    %v788 = vmul.f32 %v784, 0.5
    %v789 = vmul.f32 %v785, 0.5
    %v790 = vadd.f32 %v786, 0.5
    %v791 = vadd.f32 %v787, 0.5
    %v792 = vadd.f32 %v788, 0.5
    %v793 = vadd.f32 %v789, 0.5
    %v794 = vld [vmem:[%s7] sm:$0x3]
    %v796 = vperm.slane %v794, 0
    %v797 = vperm.slane %v794, 1
    %v800 = vmul.f32 %v790, %v796
    %v801 = vmul.f32 %v791, %v797
    %v802 = vmul.f32 %v792, %v796
    %v803 = vmul.f32 %v793, %v797
    %v804 = vadd.f32 %v800, %v801
    %805 = vadd.xlane.f32.xlu0 %v804
    %v806 = vpop.xlane.xlu0 %805
    %v807 = vadd.f32 %v802, %v803
    %808 = vadd.xlane.f32.xlu0 %v807
    %v809 = vpop.xlane.xlu0 %808
    %v810 = vld [vmem:[#allocation2] sm:$0x1]
    %v812 = vperm.slane %v810, 0
    %813 = vset.pattern.permute.xlu0 0
    %814 = vperm.xlu0 %813, %v812
    %v815 = vpop.permute.xlu0 %814
    %v817 = vadd.f32 %v806, %v815
    %v818 = vadd.f32 %v809, %v815
    %v819 = vmul.f32 %v817, 0.5
    %v820 = vmul.f32 %v818, 0.5
    %v821 = vtanh.pop %v819
    %v822 = vtanh.pop %v820
    %v823 = vmul.f32 %v821, 0.5
    %v824 = vmul.f32 %v822, 0.5
    %v825 = vadd.f32 %v823, 0.5
    %v826 = vadd.f32 %v824, 0.5
    %v829 = vlaneseq
    %v830 = vand.u32 %v829, 127
    %v831 = vperm.slane %v825, %v830
    %v832 = vperm.slane %v826, %v830
    %vm833 = vcmask 1041409
    %v834 = vsel %vm833, %v832, %v831
    %vm836 = vcmask 58368
    %837 = vst.msk [vmem:[#allocation12] sm:$0x3] %vm836, %v834
    // Predicated region
    $region58: #{tpu_custom_call.1} parent=1 // pred_check
      _
    $region59: #{tpu_custom_call.1} parent=1 // pred_check_branch
      %839 = sbr.rel (0) target = $region61
    $region60: #{tpu_custom_call.1} parent=1 // pred_region
      %841 = vsyncadd [#allocation5], 0
      %s843 = sshll.u32 [#allocation12], 4
      %s844 = int_to_ptr.vmem [resolvable:$true] %s843
      %s845 = sshll.u32 %s9, 4
      %s846 = int_to_ptr.hbm [resolvable:$true] %s845
      %848 = dma.vmem_to_hbm [thread:$0]  %s844, 32, %s846, [#allocation5]
    $region61: #{tpu_custom_call.1} parent=1 // pred_fallthru
      _
    // Predicated region
    $region62: #{tpu_custom_call.1} parent=1 // pred_check
      _
    $region63: #{tpu_custom_call.1} parent=1 // pred_check_branch
      %850 = sbr.rel (0) target = $region65
    $region64: #{tpu_custom_call.1} parent=1 // pred_region
      %852 = dma.done [#allocation5], 32
    $region65: #{tpu_custom_call.1} parent=1 // pred_fallthru
      _
    %853 = vsyncpa [#allocation4], 1
    %854 = vsyncpa [#allocation7], 1
    %855 = vsyncpa [#allocation10], 1
    %856 = vsyncpa [#allocation5], 1

// kernel: tpu_custom_call.1
$region0: #{tpu_custom_call.1}
  #allocation0 [shape = 'u32[]', space=smem, size = 0x4, offset = 0x4, fixed_abs, tag = 'smem constant byte address 0x4 - core index']
  #allocation1 [shape = 'u32[72,128]{1,0:T(1,128)}', space=vmem, size = 0x9000, scoped, tag = 'internal scratch']
  #allocation2 [shape = 'f32[1,1]{1,0:T(1,128)S(1)}', space=vmem, size = 0x200, scoped, tag = 'scoped memory for tpu_custom_call.1']
  %s0 = inlined_call_operand.hbm [shape: f32[2,32], index: 0, kind: input, shape index: {}]
  %s1 = inlined_call_operand.hbm [shape: f32[8,32], index: 1, kind: input, shape index: {}]
  %s2 = inlined_call_operand.hbm [shape: f32[8,32], index: 2, kind: input, shape index: {}]
  %s3 = inlined_call_operand.hbm [shape: bf16[32,512], index: 3, kind: input, shape index: {}]
  %s4 = inlined_call_operand.vmem [shape: f32[1,512], index: 4, kind: input, shape index: {}]
  %s5 = inlined_call_operand.hbm [shape: bf16[512,256], index: 5, kind: input, shape index: {}]
  %s6 = inlined_call_operand.vmem [shape: f32[1,256], index: 6, kind: input, shape index: {}]
  %s7 = inlined_call_operand.vmem [shape: f32[1,256], index: 7, kind: input, shape index: {}]
  %s8 = inlined_call_operand.<no memory space> [shape: f32[1,1], index: 8, kind: input, shape index: {}]
  %s9 = inlined_call_operand.hbm [shape: f32[2,8], index: 9, kind: output, shape index: {}]
  %s10 = sld [smem:[#allocation0]]
  $region66: #{tpu_custom_call.1} parent=0
    _
  %s12 = ssub.s32 1, %s10
  %s13 = scalar_select 0, %s12, %s10
  %v14 = vstv %s8
  %15 = vst [vmem:[#allocation2] sm:$0x1] %v14
  $region1: #{tpu_custom_call.1} parent=0
    #allocation3 [shape = 'u8[1024]{0}', space=vmem, size = 0x400, scoped, tag = 'input window, operand 0, single buffered']
    #allocation4 [shape = 's32[1]{0}', space=sflag, size = 0x4, scoped, tag = 'scoped memory for tpu_custom_call.1']
    #allocation5 [shape = 's32[1]{0}', space=sflag, size = 0x4, scoped, tag = 'scoped memory for tpu_custom_call.1']
    #allocation6 [shape = 'u8[4096]{0}', space=vmem, size = 0x1000, scoped, tag = 'input window, operand 1, single buffered']
    #allocation7 [shape = 's32[1]{0}', space=sflag, size = 0x4, scoped, tag = 'scoped memory for tpu_custom_call.1']
    #allocation8 [shape = 'u8[4096]{0}', space=vmem, size = 0x1000, scoped, tag = 'input window, operand 2, single buffered']
    #allocation9 [shape = 'u8[32768]{0}', space=vmem, size = 0x8000, scoped, tag = 'input window, operand 3, single buffered']
    #allocation10 [shape = 's32[1]{0}', space=sflag, size = 0x4, scoped, tag = 'scoped memory for tpu_custom_call.1']
    #allocation11 [shape = 'u8[262144]{0}', space=vmem, size = 0x40000, scoped, tag = 'input window, operand 5, single buffered']
    #allocation12 [shape = 'u8[1024]{0}', space=vmem, size = 0x400, scoped, tag = 'output window, operand 0, single buffered']
    %16 = vsyncpa [#allocation4], 0
    %17 = vsyncpa [#allocation7], 0
    %18 = vsyncpa [#allocation10], 0
    %19 = vsyncpa [#allocation5], 0
    // Predicated region
    $region2: #{tpu_custom_call.1} parent=1 // pred_check
      _
    $region3: #{tpu_custom_call.1} parent=1 // pred_check_branch
      %21 = sbr.rel (0) target = $region5
    $region4: #{tpu_custom_call.1} parent=1 // pred_region
      %23 = vsyncadd [#allocation4], 0
      %s25 = sshll.u32 %s0, 4
      %s26 = int_to_ptr.hbm [resolvable:$true] %s25
      %s27 = sshll.u32 [#allocation3], 4
      %s28 = int_to_ptr.vmem [resolvable:$true] %s27
      %30 = dma.hbm_to_vmem [thread:$0]  %s26, 32, %s28, [#allocation4]
    $region5: #{tpu_custom_call.1} parent=1 // pred_fallthru
      _
    // Predicated region
    $region6: #{tpu_custom_call.1} parent=1 // pred_check
      _
    $region7: #{tpu_custom_call.1} parent=1 // pred_check_branch
      %32 = sbr.rel (0) target = $region9
    $region8: #{tpu_custom_call.1} parent=1 // pred_region
      %34 = vsyncadd [#allocation7], 0
      %s36 = sshll.u32 %s1, 4
      %s37 = int_to_ptr.hbm [resolvable:$true] %s36
      %s38 = sshll.u32 [#allocation6], 4
      %s39 = int_to_ptr.vmem [resolvable:$true] %s38
      %41 = dma.hbm_to_vmem [thread:$0]  %s37, 128, %s39, [#allocation7]
    $region9: #{tpu_custom_call.1} parent=1 // pred_fallthru
      _
    // Predicated region
    $region10: #{tpu_custom_call.1} parent=1 // pred_check
      _
    $region11: #{tpu_custom_call.1} parent=1 // pred_check_branch
      %43 = sbr.rel (0) target = $region13
    $region12: #{tpu_custom_call.1} parent=1 // pred_region
      %45 = vsyncadd [#allocation7], 0
      %s47 = sshll.u32 %s2, 4
      %s48 = int_to_ptr.hbm [resolvable:$true] %s47
      %s49 = sshll.u32 [#allocation8], 4
      %s50 = int_to_ptr.vmem [resolvable:$true] %s49
      %52 = dma.hbm_to_vmem [thread:$0]  %s48, 128, %s50, [#allocation7]
    $region13: #{tpu_custom_call.1} parent=1 // pred_fallthru
      _
    // Predicated region
    $region14: #{tpu_custom_call.1} parent=1 // pred_check
      _
    $region15: #{tpu_custom_call.1} parent=1 // pred_check_branch
      %54 = sbr.rel (0) target = $region17
    $region16: #{tpu_custom_call.1} parent=1 // pred_region
      %56 = vsyncadd [#allocation10], 0
      %s57 = sshll.u32 %s3, 4
      %s58 = int_to_ptr.hbm [resolvable:$true] %s57
      %s59 = sshll.u32 [#allocation9], 4
      %s60 = int_to_ptr.vmem [resolvable:$true] %s59
      %65 = dma.hbm_to_vmem [thread:$0]  %s58, 1024, %s60, [#allocation10], 256, 256, 16
    $region17: #{tpu_custom_call.1} parent=1 // pred_fallthru
      _
    // Predicated region
    $region18: #{tpu_custom_call.1} parent=1 // pred_check
      _
    $region19: #{tpu_custom_call.1} parent=1 // pred_check_branch
      %67 = sbr.rel (0) target = $region21
    $region20: #{tpu_custom_call.1} parent=1 // pred_region
      _
    $region21: #{tpu_custom_call.1} parent=1 // pred_fallthru
      _
    // Predicated region
    $region22: #{tpu_custom_call.1} parent=1 // pred_check
      _
    $region23: #{tpu_custom_call.1} parent=1 // pred_check_branch
      %69 = sbr.rel (0) target = $region25
    $region24: #{tpu_custom_call.1} parent=1 // pred_region
      %71 = vsyncadd [#allocation10], 0
      %s72 = sshll.u32 %s5, 4
      %s73 = int_to_ptr.hbm [resolvable:$true] %s72
      %s74 = sshll.u32 [#allocation11], 4
      %s75 = int_to_ptr.vmem [resolvable:$true] %s74
      %80 = dma.hbm_to_vmem [thread:$0]  %s73, 8192, %s75, [#allocation10], 128, 128, 8
    $region25: #{tpu_custom_call.1} parent=1 // pred_fallthru
      _
    // Predicated region
    $region26: #{tpu_custom_call.1} parent=1 // pred_check
      _
    $region27: #{tpu_custom_call.1} parent=1 // pred_check_branch
      %82 = sbr.rel (0) target = $region29
    $region28: #{tpu_custom_call.1} parent=1 // pred_region
      _
    $region29: #{tpu_custom_call.1} parent=1 // pred_fallthru
      _
    // Predicated region
    $region30: #{tpu_custom_call.1} parent=1 // pred_check
      _
    $region31: #{tpu_custom_call.1} parent=1 // pred_check_branch
      %84 = sbr.rel (0) target = $region33
    $region32: #{tpu_custom_call.1} parent=1 // pred_region
      _
    $region33: #{tpu_custom_call.1} parent=1 // pred_fallthru
      _
    // Predicated region
    $region34: #{tpu_custom_call.1} parent=1 // pred_check
      _
    $region35: #{tpu_custom_call.1} parent=1 // pred_check_branch
      %86 = sbr.rel (0) target = $region37
    $region36: #{tpu_custom_call.1} parent=1 // pred_region
      _
    $region37: #{tpu_custom_call.1} parent=1 // pred_fallthru
      _
    // Predicated region
    $region38: #{tpu_custom_call.1} parent=1 // pred_check
      _
    $region39: #{tpu_custom_call.1} parent=1 // pred_check_branch
      %88 = sbr.rel (0) target = $region41
    $region40: #{tpu_custom_call.1} parent=1 // pred_region
      %90 = dma.done [#allocation4], 32
    $region41: #{tpu_custom_call.1} parent=1 // pred_fallthru
      _
    // Predicated region
    $region42: #{tpu_custom_call.1} parent=1 // pred_check
      _
    $region43: #{tpu_custom_call.1} parent=1 // pred_check_branch
      %92 = sbr.rel (0) target = $region45
    $region44: #{tpu_custom_call.1} parent=1 // pred_region
      %94 = dma.done [#allocation7], 128
    $region45: #{tpu_custom_call.1} parent=1 // pred_fallthru
      _
    // Predicated region
    $region46: #{tpu_custom_call.1} parent=1 // pred_check
      _
    $region47: #{tpu_custom_call.1} parent=1 // pred_check_branch
      %96 = sbr.rel (0) target = $region49
    $region48: #{tpu_custom_call.1} parent=1 // pred_region
      %98 = dma.done [#allocation7], 128
    $region49: #{tpu_custom_call.1} parent=1 // pred_fallthru
      _
    // Predicated region
    $region50: #{tpu_custom_call.1} parent=1 // pred_check
      _
    $region51: #{tpu_custom_call.1} parent=1 // pred_check_branch
      %100 = sbr.rel (0) target = $region53
    $region52: #{tpu_custom_call.1} parent=1 // pred_region
      %102 = dma.done [#allocation10], 1024
    $region53: #{tpu_custom_call.1} parent=1 // pred_fallthru
      _
    // Predicated region
    $region54: #{tpu_custom_call.1} parent=1 // pred_check
      _
    $region55: #{tpu_custom_call.1} parent=1 // pred_check_branch
      %104 = sbr.rel (0) target = $region57
    $region56: #{tpu_custom_call.1} parent=1 // pred_region
      %106 = dma.done [#allocation10], 8192
    $region57: #{tpu_custom_call.1} parent=1 // pred_fallthru
      _
    %v108 = vld [vmem:[#allocation3] sm:$0x3]
    %v109 = vld [vmem:[#allocation6] sm:$0xff]
    %v110 = vld [vmem:[#allocation8] sm:$0xff]
    %v112 = vrot.slane %v108, 1
    %v113 = vperm.slane %v108, 0
    %v114 = vperm.slane %v112, 0
    %v117 = vsub.f32 %v113, %v109
    %v118 = vsub.f32 %v114, %v109
    %v119 = vmul.f32 %v117, %v110
    %v120 = vmul.f32 %v118, %v110
    %v121 = vpack.c.bf16 %v120, %v119
    %v122 = vld [vmem:[#allocation9] sm:$0xff]
    %v123 = vld [vmem:[#allocation9 + $0x8] sm:$0xff]
    %v124 = vld [vmem:[#allocation9 + $0x10] sm:$0xff]
    %v125 = vld [vmem:[#allocation9 + $0x18] sm:$0xff]
    %v126 = vld [vmem:[#allocation9 + $0x20] sm:$0xff]
    %v127 = vld [vmem:[#allocation9 + $0x28] sm:$0xff]
    %v128 = vld [vmem:[#allocation9 + $0x30] sm:$0xff]
    %v129 = vld [vmem:[#allocation9 + $0x38] sm:$0xff]
    %v130 = vld [vmem:[%s4] sm:$0xf]
    %v132 = vperm.slane %v130, 0
    %v133 = vperm.slane %v130, 1
    %v134 = vperm.slane %v130, 2
    %v135 = vperm.slane %v130, 3
    %v148 = vunpack.c.l.b16 %v122
    %v149 = vunpack.c.h.b16 %v122
    %v150 = vunpack.c.l.b16 %v123
    %v151 = vunpack.c.h.b16 %v123
    %v152 = vunpack.c.l.b16 %v124
    %v153 = vunpack.c.h.b16 %v124
    %v154 = vunpack.c.l.b16 %v125
    %v155 = vunpack.c.h.b16 %v125
    %v156 = vunpack.c.l.b16 %v126
    %v157 = vunpack.c.h.b16 %v126
    %v158 = vunpack.c.l.b16 %v127
    %v159 = vunpack.c.h.b16 %v127
    %v160 = vunpack.c.l.b16 %v128
    %v161 = vunpack.c.h.b16 %v128
    %v162 = vunpack.c.l.b16 %v129
    %v163 = vunpack.c.h.b16 %v129
    %v164 = vpack.c.b16 %v152, %v148
    %v165 = vpack.c.b16 %v153, %v149
    %v166 = vpack.c.b16 %v154, %v150
    %v167 = vpack.c.b16 %v155, %v151
    %v168 = vpack.c.b16 %v160, %v156
    %v169 = vpack.c.b16 %v161, %v157
    %v170 = vpack.c.b16 %v162, %v158
    %v171 = vpack.c.b16 %v163, %v159
    %vm180 = vcmask 261120
    %v182 = vsel %vm180, %v121, 0
    %184 = vmatpush.bf16.msra.mxu0 0
    %185 = vmatpush.bf16.msra.mxu0 0
    %186 = vmatpush.bf16.msra.mxu0 0
    %187 = vmatpush.bf16.msra.mxu0 0
    %188 = vmatpush.bf16.msra.mxu0 0
    %189 = vmatpush.bf16.msra.mxu0 0
    %190 = vmatpush.bf16.msra.mxu0 %v168
    %191 = vmatpush.bf16.msra.mxu0 %v164
    %192 = vmatmul.bf16.gmra.mxu0 %v182
    %v193 = vpop.f32.mrf.mxu0
    %v194 = vadd.f32 %v132, %v193
    %v195 = vpop.f32.mrf.mxu0
    %v196 = vadd.f32 %v132, %v195
    %197 = vdwg.mxu0
    %198 = vmatpush.bf16.msra.mxu0 0
    %199 = vmatpush.bf16.msra.mxu0 0
    %200 = vmatpush.bf16.msra.mxu0 0
    %201 = vmatpush.bf16.msra.mxu0 0
    %202 = vmatpush.bf16.msra.mxu0 0
    %203 = vmatpush.bf16.msra.mxu0 0
    %204 = vmatpush.bf16.msra.mxu0 %v169
    %205 = vmatpush.bf16.msra.mxu0 %v165
    %206 = vmatmul.bf16.gmra.mxu0 %v182
    %v207 = vpop.f32.mrf.mxu0
    %v208 = vadd.f32 %v133, %v207
    %v209 = vpop.f32.mrf.mxu0
    %v210 = vadd.f32 %v133, %v209
    %211 = vdwg.mxu0
    %212 = vmatpush.bf16.msra.mxu0 0
    %213 = vmatpush.bf16.msra.mxu0 0
    %214 = vmatpush.bf16.msra.mxu0 0
    %215 = vmatpush.bf16.msra.mxu0 0
    %216 = vmatpush.bf16.msra.mxu0 0
    %217 = vmatpush.bf16.msra.mxu0 0
    %218 = vmatpush.bf16.msra.mxu0 %v170
    %219 = vmatpush.bf16.msra.mxu0 %v166
    %220 = vmatmul.bf16.gmra.mxu0 %v182
    %v221 = vpop.f32.mrf.mxu0
    %v222 = vadd.f32 %v134, %v221
    %v223 = vpop.f32.mrf.mxu0
    %v224 = vadd.f32 %v134, %v223
    %225 = vdwg.mxu0
    %226 = vmatpush.bf16.msra.mxu0 0
    %227 = vmatpush.bf16.msra.mxu0 0
    %228 = vmatpush.bf16.msra.mxu0 0
    %229 = vmatpush.bf16.msra.mxu0 0
    %230 = vmatpush.bf16.msra.mxu0 0
    %231 = vmatpush.bf16.msra.mxu0 0
    %232 = vmatpush.bf16.msra.mxu0 %v171
    %233 = vmatpush.bf16.msra.mxu0 %v167
    %234 = vmatmul.bf16.gmra.mxu0 %v182
    %v235 = vpop.f32.mrf.mxu0
    %v236 = vadd.f32 %v135, %v235
    %v237 = vpop.f32.mrf.mxu0
    %v238 = vadd.f32 %v135, %v237
    %239 = vdwg.mxu0
    %v240 = vmul.f32 %v194, 0.5
    %v241 = vmul.f32 %v208, 0.5
    %v242 = vmul.f32 %v222, 0.5
    %v243 = vmul.f32 %v236, 0.5
    %v244 = vmul.f32 %v196, 0.5
    %v245 = vmul.f32 %v210, 0.5
    %v246 = vmul.f32 %v224, 0.5
    %v247 = vmul.f32 %v238, 0.5
    %v248 = vtanh.pop %v240
    %v249 = vtanh.pop %v241
    %v250 = vtanh.pop %v242
    %v251 = vtanh.pop %v243
    %v252 = vtanh.pop %v244
    %v253 = vtanh.pop %v245
    %v254 = vtanh.pop %v246
    %v255 = vtanh.pop %v247
    %v256 = vmul.f32 %v248, 0.5
    %v257 = vmul.f32 %v249, 0.5
    %v258 = vmul.f32 %v250, 0.5
    %v259 = vmul.f32 %v251, 0.5
    %v260 = vmul.f32 %v252, 0.5
    %v261 = vmul.f32 %v253, 0.5
    %v262 = vmul.f32 %v254, 0.5
    %v263 = vmul.f32 %v255, 0.5
    %v264 = vadd.f32 %v256, 0.5
    %v265 = vadd.f32 %v257, 0.5
    %v266 = vadd.f32 %v258, 0.5
    %v267 = vadd.f32 %v259, 0.5
    %v268 = vadd.f32 %v260, 0.5
    %v269 = vadd.f32 %v261, 0.5
    %v270 = vadd.f32 %v262, 0.5
    %v271 = vadd.f32 %v263, 0.5
    %v272 = vpack.c.bf16 %v268, %v264
    %v273 = vpack.c.bf16 %v269, %v265
    %v274 = vpack.c.bf16 %v270, %v266
    %v275 = vpack.c.bf16 %v271, %v267
    %v276 = vld [vmem:[#allocation11] sm:$0xff]
    %v277 = vld [vmem:[#allocation11 + $0x8] sm:$0xff]
    %v278 = vld [vmem:[#allocation11 + $0x10] sm:$0xff]
    %v279 = vld [vmem:[#allocation11 + $0x18] sm:$0xff]
    %v280 = vld [vmem:[#allocation11 + $0x20] sm:$0xff]
    %v281 = vld [vmem:[#allocation11 + $0x28] sm:$0xff]
    %v282 = vld [vmem:[#allocation11 + $0x30] sm:$0xff]
    %v283 = vld [vmem:[#allocation11 + $0x38] sm:$0xff]
    %v284 = vld [vmem:[#allocation11 + $0x40] sm:$0xff]
    %v285 = vld [vmem:[#allocation11 + $0x48] sm:$0xff]
    %v286 = vld [vmem:[#allocation11 + $0x50] sm:$0xff]
    %v287 = vld [vmem:[#allocation11 + $0x58] sm:$0xff]
    %v288 = vld [vmem:[#allocation11 + $0x60] sm:$0xff]
    %v289 = vld [vmem:[#allocation11 + $0x68] sm:$0xff]
    %v290 = vld [vmem:[#allocation11 + $0x70] sm:$0xff]
    %v291 = vld [vmem:[#allocation11 + $0x78] sm:$0xff]
    %v292 = vld [vmem:[#allocation11 + $0x80] sm:$0xff]
    %v293 = vld [vmem:[#allocation11 + $0x88] sm:$0xff]
    %v294 = vld [vmem:[#allocation11 + $0x90] sm:$0xff]
    %v295 = vld [vmem:[#allocation11 + $0x98] sm:$0xff]
    %v296 = vld [vmem:[#allocation11 + $0xa0] sm:$0xff]
    %v297 = vld [vmem:[#allocation11 + $0xa8] sm:$0xff]
    %v298 = vld [vmem:[#allocation11 + $0xb0] sm:$0xff]
    %v299 = vld [vmem:[#allocation11 + $0xb8] sm:$0xff]
    %v300 = vld [vmem:[#allocation11 + $0xc0] sm:$0xff]
    %v301 = vld [vmem:[#allocation11 + $0xc8] sm:$0xff]
    %v302 = vld [vmem:[#allocation11 + $0xd0] sm:$0xff]
    %v303 = vld [vmem:[#allocation11 + $0xd8] sm:$0xff]
    %v304 = vld [vmem:[#allocation11 + $0xe0] sm:$0xff]
    %v305 = vld [vmem:[#allocation11 + $0xe8] sm:$0xff]
    %v306 = vld [vmem:[#allocation11 + $0xf0] sm:$0xff]
    %v307 = vld [vmem:[#allocation11 + $0xf8] sm:$0xff]
    %v308 = vld [vmem:[#allocation11 + $0x100] sm:$0xff]
    %v309 = vld [vmem:[#allocation11 + $0x108] sm:$0xff]
    %v310 = vld [vmem:[#allocation11 + $0x110] sm:$0xff]
    %v311 = vld [vmem:[#allocation11 + $0x118] sm:$0xff]
    %v312 = vld [vmem:[#allocation11 + $0x120] sm:$0xff]
    %v313 = vld [vmem:[#allocation11 + $0x128] sm:$0xff]
    %v314 = vld [vmem:[#allocation11 + $0x130] sm:$0xff]
    %v315 = vld [vmem:[#allocation11 + $0x138] sm:$0xff]
    %v316 = vld [vmem:[#allocation11 + $0x140] sm:$0xff]
    %v317 = vld [vmem:[#allocation11 + $0x148] sm:$0xff]
    %v318 = vld [vmem:[#allocation11 + $0x150] sm:$0xff]
    %v319 = vld [vmem:[#allocation11 + $0x158] sm:$0xff]
    %v320 = vld [vmem:[#allocation11 + $0x160] sm:$0xff]
    %v321 = vld [vmem:[#allocation11 + $0x168] sm:$0xff]
    %v322 = vld [vmem:[#allocation11 + $0x170] sm:$0xff]
    %v323 = vld [vmem:[#allocation11 + $0x178] sm:$0xff]
    %v324 = vld [vmem:[#allocation11 + $0x180] sm:$0xff]
    %v325 = vld [vmem:[#allocation11 + $0x188] sm:$0xff]
    %v326 = vld [vmem:[#allocation11 + $0x190] sm:$0xff]
    %v327 = vld [vmem:[#allocation11 + $0x198] sm:$0xff]
    %v328 = vld [vmem:[#allocation11 + $0x1a0] sm:$0xff]
    %v329 = vld [vmem:[#allocation11 + $0x1a8] sm:$0xff]
    %v330 = vld [vmem:[#allocation11 + $0x1b0] sm:$0xff]
    %v331 = vld [vmem:[#allocation11 + $0x1b8] sm:$0xff]
    %v332 = vld [vmem:[#allocation11 + $0x1c0] sm:$0xff]
    %v333 = vld [vmem:[#allocation11 + $0x1c8] sm:$0xff]
    %v334 = vld [vmem:[#allocation11 + $0x1d0] sm:$0xff]
    %v335 = vld [vmem:[#allocation11 + $0x1d8] sm:$0xff]
    %v336 = vld [vmem:[#allocation11 + $0x1e0] sm:$0xff]
    %v337 = vld [vmem:[#allocation11 + $0x1e8] sm:$0xff]
    %v338 = vld [vmem:[#allocation11 + $0x1f0] sm:$0xff]
    %v339 = vld [vmem:[#allocation11 + $0x1f8] sm:$0xff]
    %v340 = vld [vmem:[%s6] sm:$0x3]
    %v342 = vperm.slane %v340, 0
    %v343 = vperm.slane %v340, 1
    %v410 = vunpack.c.l.b16 %v276
    %v411 = vunpack.c.h.b16 %v276
    %v412 = vunpack.c.l.b16 %v277
    %v413 = vunpack.c.h.b16 %v277
    %v414 = vunpack.c.l.b16 %v278
    %v415 = vunpack.c.h.b16 %v278
    %v416 = vunpack.c.l.b16 %v279
    %v417 = vunpack.c.h.b16 %v279
    %v418 = vunpack.c.l.b16 %v280
    %v419 = vunpack.c.h.b16 %v280
    %v420 = vunpack.c.l.b16 %v281
    %v421 = vunpack.c.h.b16 %v281
    %v422 = vunpack.c.l.b16 %v282
    %v423 = vunpack.c.h.b16 %v282
    %v424 = vunpack.c.l.b16 %v283
    %v425 = vunpack.c.h.b16 %v283
    %v426 = vunpack.c.l.b16 %v284
    %v427 = vunpack.c.h.b16 %v284
    %v428 = vunpack.c.l.b16 %v285
    %v429 = vunpack.c.h.b16 %v285
    %v430 = vunpack.c.l.b16 %v286
    %v431 = vunpack.c.h.b16 %v286
    %v432 = vunpack.c.l.b16 %v287
    %v433 = vunpack.c.h.b16 %v287
    %v434 = vunpack.c.l.b16 %v288
    %v435 = vunpack.c.h.b16 %v288
    %v436 = vunpack.c.l.b16 %v289
    %v437 = vunpack.c.h.b16 %v289
    %v438 = vunpack.c.l.b16 %v290
    %v439 = vunpack.c.h.b16 %v290
    %v440 = vunpack.c.l.b16 %v291
    %v441 = vunpack.c.h.b16 %v291
    %v442 = vunpack.c.l.b16 %v292
    %v443 = vunpack.c.h.b16 %v292
    %v444 = vunpack.c.l.b16 %v293
    %v445 = vunpack.c.h.b16 %v293
    %v446 = vunpack.c.l.b16 %v294
    %v447 = vunpack.c.h.b16 %v294
    %v448 = vunpack.c.l.b16 %v295
    %v449 = vunpack.c.h.b16 %v295
    %v450 = vunpack.c.l.b16 %v296
    %v451 = vunpack.c.h.b16 %v296
    %v452 = vunpack.c.l.b16 %v297
    %v453 = vunpack.c.h.b16 %v297
    %v454 = vunpack.c.l.b16 %v298
    %v455 = vunpack.c.h.b16 %v298
    %v456 = vunpack.c.l.b16 %v299
    %v457 = vunpack.c.h.b16 %v299
    %v458 = vunpack.c.l.b16 %v300
    %v459 = vunpack.c.h.b16 %v300
    %v460 = vunpack.c.l.b16 %v301
    %v461 = vunpack.c.h.b16 %v301
    %v462 = vunpack.c.l.b16 %v302
    %v463 = vunpack.c.h.b16 %v302
    %v464 = vunpack.c.l.b16 %v303
    %v465 = vunpack.c.h.b16 %v303
    %v466 = vunpack.c.l.b16 %v304
    %v467 = vunpack.c.h.b16 %v304
    %v468 = vunpack.c.l.b16 %v305
    %v469 = vunpack.c.h.b16 %v305
    %v470 = vunpack.c.l.b16 %v306
    %v471 = vunpack.c.h.b16 %v306
    %v472 = vunpack.c.l.b16 %v307
    %v473 = vunpack.c.h.b16 %v307
    %v474 = vunpack.c.l.b16 %v308
    %v475 = vunpack.c.h.b16 %v308
    %v476 = vunpack.c.l.b16 %v309
    %v477 = vunpack.c.h.b16 %v309
    %v478 = vunpack.c.l.b16 %v310
    %v479 = vunpack.c.h.b16 %v310
    %v480 = vunpack.c.l.b16 %v311
    %v481 = vunpack.c.h.b16 %v311
    %v482 = vunpack.c.l.b16 %v312
    %v483 = vunpack.c.h.b16 %v312
    %v484 = vunpack.c.l.b16 %v313
    %v485 = vunpack.c.h.b16 %v313
    %v486 = vunpack.c.l.b16 %v314
    %v487 = vunpack.c.h.b16 %v314
    %v488 = vunpack.c.l.b16 %v315
    %v489 = vunpack.c.h.b16 %v315
    %v490 = vunpack.c.l.b16 %v316
    %v491 = vunpack.c.h.b16 %v316
    %v492 = vunpack.c.l.b16 %v317
    %v493 = vunpack.c.h.b16 %v317
    %v494 = vunpack.c.l.b16 %v318
    %v495 = vunpack.c.h.b16 %v318
    %v496 = vunpack.c.l.b16 %v319
    %v497 = vunpack.c.h.b16 %v319
    %v498 = vunpack.c.l.b16 %v320
    %v499 = vunpack.c.h.b16 %v320
    %v500 = vunpack.c.l.b16 %v321
    %v501 = vunpack.c.h.b16 %v321
    %v502 = vunpack.c.l.b16 %v322
    %v503 = vunpack.c.h.b16 %v322
    %v504 = vunpack.c.l.b16 %v323
    %v505 = vunpack.c.h.b16 %v323
    %v506 = vunpack.c.l.b16 %v324
    %v507 = vunpack.c.h.b16 %v324
    %v508 = vunpack.c.l.b16 %v325
    %v509 = vunpack.c.h.b16 %v325
    %v510 = vunpack.c.l.b16 %v326
    %v511 = vunpack.c.h.b16 %v326
    %v512 = vunpack.c.l.b16 %v327
    %v513 = vunpack.c.h.b16 %v327
    %v514 = vunpack.c.l.b16 %v328
    %v515 = vunpack.c.h.b16 %v328
    %v516 = vunpack.c.l.b16 %v329
    %v517 = vunpack.c.h.b16 %v329
    %v518 = vunpack.c.l.b16 %v330
    %v519 = vunpack.c.h.b16 %v330
    %v520 = vunpack.c.l.b16 %v331
    %v521 = vunpack.c.h.b16 %v331
    %v522 = vunpack.c.l.b16 %v332
    %v523 = vunpack.c.h.b16 %v332
    %v524 = vunpack.c.l.b16 %v333
    %v525 = vunpack.c.h.b16 %v333
    %v526 = vunpack.c.l.b16 %v334
    %v527 = vunpack.c.h.b16 %v334
    %v528 = vunpack.c.l.b16 %v335
    %v529 = vunpack.c.h.b16 %v335
    %v530 = vunpack.c.l.b16 %v336
    %v531 = vunpack.c.h.b16 %v336
    %v532 = vunpack.c.l.b16 %v337
    %v533 = vunpack.c.h.b16 %v337
    %v534 = vunpack.c.l.b16 %v338
    %v535 = vunpack.c.h.b16 %v338
    %v536 = vunpack.c.l.b16 %v339
    %v537 = vunpack.c.h.b16 %v339
    %v538 = vpack.c.b16 %v412, %v410
    %v539 = vpack.c.b16 %v413, %v411
    %v540 = vpack.c.b16 %v416, %v414
    %v541 = vpack.c.b16 %v417, %v415
    %v542 = vpack.c.b16 %v420, %v418
    %v543 = vpack.c.b16 %v421, %v419
    %v544 = vpack.c.b16 %v424, %v422
    %v545 = vpack.c.b16 %v425, %v423
    %v546 = vpack.c.b16 %v428, %v426
    %v547 = vpack.c.b16 %v429, %v427
    %v548 = vpack.c.b16 %v432, %v430
    %v549 = vpack.c.b16 %v433, %v431
    %v550 = vpack.c.b16 %v436, %v434
    %v551 = vpack.c.b16 %v437, %v435
    %v552 = vpack.c.b16 %v440, %v438
    %v553 = vpack.c.b16 %v441, %v439
    %v554 = vpack.c.b16 %v444, %v442
    %v555 = vpack.c.b16 %v445, %v443
    %v556 = vpack.c.b16 %v448, %v446
    %v557 = vpack.c.b16 %v449, %v447
    %v558 = vpack.c.b16 %v452, %v450
    %v559 = vpack.c.b16 %v453, %v451
    %v560 = vpack.c.b16 %v456, %v454
    %v561 = vpack.c.b16 %v457, %v455
    %v562 = vpack.c.b16 %v460, %v458
    %v563 = vpack.c.b16 %v461, %v459
    %v564 = vpack.c.b16 %v464, %v462
    %v565 = vpack.c.b16 %v465, %v463
    %v566 = vpack.c.b16 %v468, %v466
    %v567 = vpack.c.b16 %v469, %v467
    %v568 = vpack.c.b16 %v472, %v470
    %v569 = vpack.c.b16 %v473, %v471
    %v570 = vpack.c.b16 %v476, %v474
    %v571 = vpack.c.b16 %v477, %v475
    %v572 = vpack.c.b16 %v480, %v478
    %v573 = vpack.c.b16 %v481, %v479
    %v574 = vpack.c.b16 %v484, %v482
    %v575 = vpack.c.b16 %v485, %v483
    %v576 = vpack.c.b16 %v488, %v486
    %v577 = vpack.c.b16 %v489, %v487
    %v578 = vpack.c.b16 %v492, %v490
    %v579 = vpack.c.b16 %v493, %v491
    %v580 = vpack.c.b16 %v496, %v494
    %v581 = vpack.c.b16 %v497, %v495
    %v582 = vpack.c.b16 %v500, %v498
    %v583 = vpack.c.b16 %v501, %v499
    %v584 = vpack.c.b16 %v504, %v502
    %v585 = vpack.c.b16 %v505, %v503
    %v586 = vpack.c.b16 %v508, %v506
    %v587 = vpack.c.b16 %v509, %v507
    %v588 = vpack.c.b16 %v512, %v510
    %v589 = vpack.c.b16 %v513, %v511
    %v590 = vpack.c.b16 %v516, %v514
    %v591 = vpack.c.b16 %v517, %v515
    %v592 = vpack.c.b16 %v520, %v518
    %v593 = vpack.c.b16 %v521, %v519
    %v594 = vpack.c.b16 %v524, %v522
    %v595 = vpack.c.b16 %v525, %v523
    %v596 = vpack.c.b16 %v528, %v526
    %v597 = vpack.c.b16 %v529, %v527
    %v598 = vpack.c.b16 %v532, %v530
    %v599 = vpack.c.b16 %v533, %v531
    %v600 = vpack.c.b16 %v536, %v534
    %v601 = vpack.c.b16 %v537, %v535
    %666 = vmatpush.bf16.msra.mxu0 %v552
    %667 = vmatpush.bf16.msra.mxu0 %v550
    %668 = vmatpush.bf16.msra.mxu0 %v548
    %669 = vmatpush.bf16.msra.mxu0 %v546
    %670 = vmatpush.bf16.msra.mxu0 %v544
    %671 = vmatpush.bf16.msra.mxu0 %v542
    %672 = vmatpush.bf16.msra.mxu0 %v540
    %673 = vmatpush.bf16.msra.mxu0 %v538
    %674 = vmatmul.bf16.gmra.mxu0 %v272
    %v675 = vpop.f32.mrf.mxu0
    %v676 = vadd.f32 %v342, %v675
    %v677 = vpop.f32.mrf.mxu0
    %v678 = vadd.f32 %v342, %v677
    %679 = vdwg.mxu0
    %680 = vmatpush.bf16.msra.mxu0 %v568
    %681 = vmatpush.bf16.msra.mxu0 %v566
    %682 = vmatpush.bf16.msra.mxu0 %v564
    %683 = vmatpush.bf16.msra.mxu0 %v562
    %684 = vmatpush.bf16.msra.mxu0 %v560
    %685 = vmatpush.bf16.msra.mxu0 %v558
    %686 = vmatpush.bf16.msra.mxu0 %v556
    %687 = vmatpush.bf16.msra.mxu0 %v554
    %688 = vmatmul.bf16.gmra.mxu0 %v273
    %v689 = vpop.f32.mrf.mxu0
    %v690 = vadd.f32 %v676, %v689
    %v691 = vpop.f32.mrf.mxu0
    %v692 = vadd.f32 %v678, %v691
    %693 = vdwg.mxu0
    %694 = vmatpush.bf16.msra.mxu0 %v584
    %695 = vmatpush.bf16.msra.mxu0 %v582
    %696 = vmatpush.bf16.msra.mxu0 %v580
    %697 = vmatpush.bf16.msra.mxu0 %v578
    %698 = vmatpush.bf16.msra.mxu0 %v576
    %699 = vmatpush.bf16.msra.mxu0 %v574
    %700 = vmatpush.bf16.msra.mxu0 %v572
    %701 = vmatpush.bf16.msra.mxu0 %v570
    %702 = vmatmul.bf16.gmra.mxu0 %v274
    %v703 = vpop.f32.mrf.mxu0
    %v704 = vadd.f32 %v690, %v703
    %v705 = vpop.f32.mrf.mxu0
    %v706 = vadd.f32 %v692, %v705
    %707 = vdwg.mxu0
    %708 = vmatpush.bf16.msra.mxu0 %v600
    %709 = vmatpush.bf16.msra.mxu0 %v598
    %710 = vmatpush.bf16.msra.mxu0 %v596
    %711 = vmatpush.bf16.msra.mxu0 %v594
    %712 = vmatpush.bf16.msra.mxu0 %v592
    %713 = vmatpush.bf16.msra.mxu0 %v590
    %714 = vmatpush.bf16.msra.mxu0 %v588
    %715 = vmatpush.bf16.msra.mxu0 %v586
    %716 = vmatmul.bf16.gmra.mxu0 %v275
    %v717 = vpop.f32.mrf.mxu0
    %v718 = vadd.f32 %v704, %v717
    %v719 = vpop.f32.mrf.mxu0
    %v720 = vadd.f32 %v706, %v719
    %721 = vdwg.mxu0
    %722 = vmatpush.bf16.msra.mxu0 %v553
    %723 = vmatpush.bf16.msra.mxu0 %v551
    %724 = vmatpush.bf16.msra.mxu0 %v549
    %725 = vmatpush.bf16.msra.mxu0 %v547
    %726 = vmatpush.bf16.msra.mxu0 %v545
    %727 = vmatpush.bf16.msra.mxu0 %v543
    %728 = vmatpush.bf16.msra.mxu0 %v541
    %729 = vmatpush.bf16.msra.mxu0 %v539
    %730 = vmatmul.bf16.gmra.mxu0 %v272
    %v731 = vpop.f32.mrf.mxu0
    %v732 = vadd.f32 %v343, %v731
    %v733 = vpop.f32.mrf.mxu0
    %v734 = vadd.f32 %v343, %v733
    %735 = vdwg.mxu0
    %736 = vmatpush.bf16.msra.mxu0 %v569
    %737 = vmatpush.bf16.msra.mxu0 %v567
    %738 = vmatpush.bf16.msra.mxu0 %v565
    %739 = vmatpush.bf16.msra.mxu0 %v563
    %740 = vmatpush.bf16.msra.mxu0 %v561
    %741 = vmatpush.bf16.msra.mxu0 %v559
    %742 = vmatpush.bf16.msra.mxu0 %v557
    %743 = vmatpush.bf16.msra.mxu0 %v555
    %744 = vmatmul.bf16.gmra.mxu0 %v273
    %v745 = vpop.f32.mrf.mxu0
    %v746 = vadd.f32 %v732, %v745
    %v747 = vpop.f32.mrf.mxu0
    %v748 = vadd.f32 %v734, %v747
    %749 = vdwg.mxu0
    %750 = vmatpush.bf16.msra.mxu0 %v585
    %751 = vmatpush.bf16.msra.mxu0 %v583
    %752 = vmatpush.bf16.msra.mxu0 %v581
    %753 = vmatpush.bf16.msra.mxu0 %v579
    %754 = vmatpush.bf16.msra.mxu0 %v577
    %755 = vmatpush.bf16.msra.mxu0 %v575
    %756 = vmatpush.bf16.msra.mxu0 %v573
    %757 = vmatpush.bf16.msra.mxu0 %v571
    %758 = vmatmul.bf16.gmra.mxu0 %v274
    %v759 = vpop.f32.mrf.mxu0
    %v760 = vadd.f32 %v746, %v759
    %v761 = vpop.f32.mrf.mxu0
    %v762 = vadd.f32 %v748, %v761
    %763 = vdwg.mxu0
    %764 = vmatpush.bf16.msra.mxu0 %v601
    %765 = vmatpush.bf16.msra.mxu0 %v599
    %766 = vmatpush.bf16.msra.mxu0 %v597
    %767 = vmatpush.bf16.msra.mxu0 %v595
    %768 = vmatpush.bf16.msra.mxu0 %v593
    %769 = vmatpush.bf16.msra.mxu0 %v591
    %770 = vmatpush.bf16.msra.mxu0 %v589
    %771 = vmatpush.bf16.msra.mxu0 %v587
    %772 = vmatmul.bf16.gmra.mxu0 %v275
    %v773 = vpop.f32.mrf.mxu0
    %v774 = vadd.f32 %v760, %v773
    %v775 = vpop.f32.mrf.mxu0
    %v776 = vadd.f32 %v762, %v775
    %777 = vdwg.mxu0
    %v778 = vmul.f32 %v718, 0.5
    %v779 = vmul.f32 %v774, 0.5
    %v780 = vmul.f32 %v720, 0.5
    %v781 = vmul.f32 %v776, 0.5
    %v782 = vtanh.pop %v778
    %v783 = vtanh.pop %v779
    %v784 = vtanh.pop %v780
    %v785 = vtanh.pop %v781
    %v786 = vmul.f32 %v782, 0.5
    %v787 = vmul.f32 %v783, 0.5
    %v788 = vmul.f32 %v784, 0.5
    %v789 = vmul.f32 %v785, 0.5
    %v790 = vadd.f32 %v786, 0.5
    %v791 = vadd.f32 %v787, 0.5
    %v792 = vadd.f32 %v788, 0.5
    %v793 = vadd.f32 %v789, 0.5
    %v794 = vld [vmem:[%s7] sm:$0x3]
    %v796 = vperm.slane %v794, 0
    %v797 = vperm.slane %v794, 1
    %v800 = vmul.f32 %v790, %v796
    %v801 = vmul.f32 %v791, %v797
    %v802 = vmul.f32 %v792, %v796
    %v803 = vmul.f32 %v793, %v797
    %v804 = vadd.f32 %v800, %v801
    %805 = vadd.xlane.f32.xlu0 %v804
    %v806 = vpop.xlane.xlu0 %805
    %v807 = vadd.f32 %v802, %v803
    %808 = vadd.xlane.f32.xlu0 %v807
    %v809 = vpop.xlane.xlu0 %808
    %v810 = vld [vmem:[#allocation2] sm:$0x1]
    %v812 = vperm.slane %v810, 0
    %813 = vset.pattern.permute.xlu0 0
    %814 = vperm.xlu0 %813, %v812
    %v815 = vpop.permute.xlu0 %814
    %v817 = vadd.f32 %v806, %v815
    %v818 = vadd.f32 %v809, %v815
    %v819 = vmul.f32 %v817, 0.5
    %v820 = vmul.f32 %v818, 0.5
    %v821 = vtanh.pop %v819
    %v822 = vtanh.pop %v820
    %v823 = vmul.f32 %v821, 0.5
    %v824 = vmul.f32 %v822, 0.5
    %v825 = vadd.f32 %v823, 0.5
    %v826 = vadd.f32 %v824, 0.5
    %v829 = vlaneseq
    %v830 = vand.u32 %v829, 127
    %v831 = vperm.slane %v825, %v830
    %v832 = vperm.slane %v826, %v830
    %vm833 = vcmask 1041409
    %v834 = vsel %vm833, %v832, %v831
    %vm836 = vcmask 58368
    %837 = vst.msk [vmem:[#allocation12] sm:$0x3] %vm836, %v834
    // Predicated region
    $region58: #{tpu_custom_call.1} parent=1 // pred_check
      _
    $region59: #{tpu_custom_call.1} parent=1 // pred_check_branch
      %839 = sbr.rel (0) target = $region61
    $region60: #{tpu_custom_call.1} parent=1 // pred_region
      %841 = vsyncadd [#allocation5], 0
      %s843 = sshll.u32 [#allocation12], 4
      %s844 = int_to_ptr.vmem [resolvable:$true] %s843
      %s845 = sshll.u32 %s9, 4
      %s846 = int_to_ptr.hbm [resolvable:$true] %s845
      %848 = dma.vmem_to_hbm [thread:$0]  %s844, 32, %s846, [#allocation5]
    $region61: #{tpu_custom_call.1} parent=1 // pred_fallthru
      _
    // Predicated region
    $region62: #{tpu_custom_call.1} parent=1 // pred_check
      _
    $region63: #{tpu_custom_call.1} parent=1 // pred_check_branch
      %850 = sbr.rel (0) target = $region65
    $region64: #{tpu_custom_call.1} parent=1 // pred_region
      %852 = dma.done [#allocation5], 32
    $region65: #{tpu_custom_call.1} parent=1 // pred_fallthru
      _
    %853 = vsyncpa [#allocation4], 1
    %854 = vsyncpa [#allocation7], 1
    %855 = vsyncpa [#allocation10], 1
    %856 = vsyncpa [#allocation5], 1

</llo_original>
